<compile_context>
chip_gen: v5e
topology: v5e:2x2
jax: 0.10.0
libtpu: 0.0.40
codegen_flags: <defaults>
</compile_context>

<pallas_src>
import functools

import jax
import jax.numpy as jnp
from jax import lax
from jax.experimental import pallas as pl
from jax.experimental.pallas import tpu as pltpu


def mpnn_kernel(
    # grid-invariant inputs (fetched once, resident in VMEM)
    x_ref, invdeg_ref,
    fcW_ref, fcb_ref,
    e1W_ref, e1b_ref, e2W_ref, e2b_ref,
    R_ref, Sel_ref,
    Whh_ref, Wih_ref,
    cb_ref, br_ref, bz_ref, bin_ref, bhn_ref,
    # edge-tiled inputs (streamed per grid step)
    src_ref, dst_ref, ea_ref,
    # output
    out_ref,
    # scratch
    h_s, agg_s,
    *, hidden_dim, num_nodes):
  H = hidden_dim
  N = num_nodes
  f32, bf16 = jnp.float32, jnp.bfloat16
  TE = ea_ref.shape[0]

  s = pl.program_id(0)
  e = pl.program_id(1)
  last_e = pl.num_programs(1) - 1

  # ---- step-0 init: h0 = relu(x @ W_fc + b_fc) ----
  @pl.when(jnp.logical_and(s == 0, e == 0))
  def _():
    h_s[...] = jnp.maximum(
        jnp.dot(x_ref[...], fcW_ref[...], preferred_element_type=f32)
        + fcb_ref[...], 0.0)

  # ---- per-step init of the mean-aggregation accumulator ----
  @pl.when(e == 0)
  def _():
    agg_s[...] = jnp.zeros_like(agg_s)

  h = h_s[...]                       # (N, H) f32, state at start of this step
  hb = h.astype(bf16)

  # ---- gather / scatter one-hots built in-kernel from int32 indices ----
  # (only 8 bytes/edge of indices ever cross HBM; padded edges carry dst == N
  #  which matches no node row and therefore contributes nothing)
  lane_nodes = lax.broadcasted_iota(jnp.int32, (TE, N), 1)
  S_tile = jnp.where(lane_nodes == src_ref[...], 1.0, 0.0).astype(bf16)  # (TE,N)
  D_tile = jnp.where(lane_nodes == dst_ref[...], 1.0, 0.0).astype(bf16)  # (TE,N)

  # ---- edge network for this tile: eW[e, j*H + k] = W_e[j, k] ----
  eh = jnp.maximum(
      jnp.dot(ea_ref[...], e1W_ref[...], preferred_element_type=f32)
      + e1b_ref[...], 0.0)
  eW = jnp.dot(eh.astype(bf16), e2W_ref[...],
               preferred_element_type=f32) + e2b_ref[...]        # (TE, H*H) f32

  # ---- NNConv message on the MXU: msg[e, k] = sum_j x_src[e, j] * W_e[j, k] ----
  x_src = jnp.dot(S_tile, hb, preferred_element_type=f32)         # (TE, H)
  x_rep = jnp.dot(x_src.astype(bf16), R_ref[...],
                  preferred_element_type=f32)                     # (TE, H*H)
  P = (x_rep * eW).astype(bf16)                                   # f32 VPU mul
  msgs = jnp.dot(P, Sel_ref[...], preferred_element_type=f32)     # (TE, H)

  # ---- scatter-sum into the accumulator: agg += D^T @ msgs (transposed-LHS dot) ----
  agg_s[...] += lax.dot_general(
      D_tile, msgs.astype(bf16), (((0,), (0,)), ((), ())),
      preferred_element_type=f32)                                 # (N, H)

  # ---- node update on the last edge tile: root + bias + ReLU, then GRU ----
  @pl.when(e == last_e)
  def _():
    agg = agg_s[...] * invdeg_ref[...]                            # mean aggr
    # single 128-lane-wide MXU call for all h-side matmuls:
    #   hg = h @ [W_root | W_hr | W_hz | W_hn]
    hg = jnp.dot(hb, Whh_ref[...], preferred_element_type=f32)    # (N, 4H)
    m = jnp.maximum(agg + hg[:, 0:H] + cb_ref[...], 0.0)
    mb = m.astype(bf16)
    #   mg = m @ [W_ir | W_iz | W_in]
    mg = jnp.dot(mb, Wih_ref[...], preferred_element_type=f32)    # (N, 3H)
    # GRU cell, PyTorch gate order (r, z, n)
    r = jax.nn.sigmoid(mg[:, 0:H] + hg[:, H:2 * H] + br_ref[...])
    z = jax.nn.sigmoid(mg[:, H:2 * H] + hg[:, 2 * H:3 * H] + bz_ref[...])
    n = jnp.tanh(mg[:, 2 * H:3 * H] + bin_ref[...]
                 + r * (hg[:, 3 * H:4 * H] + bhn_ref[...]))
    h_new = (1.0 - z) * n + z * h
    h_s[...] = h_new
    out_ref[...] = h_new


def mpnn_forward(x, edge_index, edge_attr, params, hidden_dim, num_steps,
                 tile_e=256):
  H = hidden_dim
  N, node_dim = x.shape
  E, edge_dim = edge_attr.shape
  f32, bf16, i32 = jnp.float32, jnp.bfloat16, jnp.int32

  # ---- edge tiling: pad E to a multiple of TILE_E; padded edges get dst=N ----
  tile_e = max(8, (int(tile_e) // 8) * 8)
  tile_e = min(tile_e, max(8, pl.cdiv(E, 8) * 8))
  E_pad = pl.cdiv(E, tile_e) * tile_e
  n_e_tiles = E_pad // tile_e
  pad = E_pad - E

  src = edge_index[0].astype(i32)
  dst = edge_index[1].astype(i32)
  if pad:
    src_p = jnp.concatenate([src, jnp.zeros((pad,), i32)])
    dst_p = jnp.concatenate([dst, jnp.full((pad,), N, i32)])   # masked edges
    ea_p = jnp.concatenate([edge_attr, jnp.zeros((pad, edge_dim), edge_attr.dtype)])
  else:
    src_p, dst_p, ea_p = src, dst, edge_attr

  # mean-aggregation scale (isolated nodes get 0, matching NNConv aggr='mean')
  deg = jnp.zeros((N,), f32).at[dst].add(1.0)
  inv_deg = jnp.where(deg > 0, 1.0 / jnp.maximum(deg, 1.0), 0.0).reshape(N, 1)

  # MXU helpers for the per-edge matmul (static 0/1 matrices)
  eyeH = jnp.eye(H, dtype=f32)
  R = jnp.kron(eyeH, jnp.ones((1, H), f32))      # (H, H*H) lane replication
  Sel = jnp.tile(eyeH, (H, 1))                   # (H*H, H) block-sum selector

  # fused node-side weights (PyTorch GRU layout: [r | z | n] along output dim)
  Wih, Whh = params['gru_w_ih'], params['gru_w_hh']      # (H, 3H)
  bih, bhh = params['gru_b_ih'], params['gru_b_hh']      # (1, 3H)
  Whh_cat = jnp.concatenate(
      [params['conv_root'], Whh[:, 0:H], Whh[:, H:2 * H], Whh[:, 2 * H:3 * H]],
      axis=1)                                            # (H, 4H) -> 128 lanes
  Wih_cat = Wih                                          # (H, 3H)
  b_r = bih[:, 0:H] + bhh[:, 0:H]
  b_z = bih[:, H:2 * H] + bhh[:, H:2 * H]
  b_in = bih[:, 2 * H:3 * H]
  b_hn = bhh[:, 2 * H:3 * H]                             # stays inside r*(...)

  def b16(a):
    return a.astype(bf16)

  full_args = (
      b16(x), inv_deg.astype(f32),
      b16(params['fc_w']), params['fc_b'].astype(f32),
      b16(params['edge1_w']), params['edge1_b'].astype(f32),
      b16(params['edge2_w']), params['edge2_b'].astype(f32),
      b16(R), b16(Sel),
      b16(Whh_cat), b16(Wih_cat),
      params['conv_b'].astype(f32),
      b_r.astype(f32), b_z.astype(f32), b_in.astype(f32), b_hn.astype(f32),
  )
  edge_args = (src_p.reshape(E_pad, 1), dst_p.reshape(E_pad, 1), b16(ea_p))

  def full_spec(a):
    return pl.BlockSpec(a.shape, lambda s, e, nd=a.ndim: (0,) * nd)

  def edge_spec(a):
    return pl.BlockSpec((tile_e,) + a.shape[1:],
                        lambda s, e, nd=a.ndim: (e,) + (0,) * (nd - 1))

  in_specs = [full_spec(a) for a in full_args] + [edge_spec(a) for a in edge_args]

  # ---- VMEM budget: resident params + double-buffered edge tiles + scratch
  #      + in-kernel (TILE_E, H*H) temporaries, clamped to chip capacity ----
  def nbytes(a):
    return int(a.size) * a.dtype.itemsize

  resident = sum(nbytes(a) for a in full_args)
  per_tile = sum(nbytes(a) for a in edge_args) // n_e_tiles
  temps = 5 * tile_e * H * H * 4                 # eW, x_rep, P (+ slack), f32
  scratch = 3 * N * H * 4                        # h_s, agg_s, resident out block
  vmem_est = resident + 2 * per_tile + temps + scratch + (4 << 20)
  try:
    vmem_cap = int(pltpu.get_tpu_info().vmem_capacity_bytes)
  except Exception:
    vmem_cap = 64 << 20                          # conservative (v7x per-TC)
  vmem_limit = int(min(max(vmem_est, 16 << 20), (vmem_cap * 3) // 4))

  # ---- advisory cost estimate so XLA can schedule around the custom call ----
  flops = num_steps * (6 * E_pad * H ** 3 + 4 * E_pad * N * H
                       + 14 * N * H * H + 2 * E_pad * edge_dim * H) \
      + 2 * N * node_dim * H
  transcendentals = num_steps * 3 * N * H
  bytes_accessed = (resident + num_steps * sum(nbytes(a) for a in edge_args)
                    + N * H * 4)

  kernel = functools.partial(mpnn_kernel, hidden_dim=H, num_nodes=N)
  return pl.pallas_call(
      kernel,
      out_shape=jax.ShapeDtypeStruct((N, H), f32),
      grid=(num_steps, n_e_tiles),
      in_specs=in_specs,
      out_specs=pl.BlockSpec((N, H), lambda s, e: (0, 0)),
      scratch_shapes=[pltpu.VMEM((N, H), f32),   # h_s  (hidden state)
                      pltpu.VMEM((N, H), f32)],  # agg_s (message accumulator)
      compiler_params=pltpu.CompilerParams(
          dimension_semantics=("arbitrary", "arbitrary"),
          vmem_limit_bytes=vmem_limit),
      cost_estimate=pl.CostEstimate(
          flops=int(flops), transcendentals=int(transcendentals),
          bytes_accessed=int(bytes_accessed)),
  )(*full_args, *edge_args)


def init_params(key, hidden_dim, edge_dim, node_dim):
  H = hidden_dim
  ks = jax.random.split(key, 12)
  scale = 0.1

  def w(k, shape):
    return jax.random.normal(k, shape, jnp.float32) * scale

  # Weights stored as (in, out) so the kernel uses x @ W + b.
  return dict(
      fc_w=w(ks[0], (node_dim, H)),        fc_b=w(ks[1], (1, H)),
      edge1_w=w(ks[2], (edge_dim, H)),     edge1_b=w(ks[3], (1, H)),
      edge2_w=w(ks[4], (H, H * H)),        edge2_b=w(ks[5], (1, H * H)),
      conv_root=w(ks[6], (H, H)),          conv_b=w(ks[7], (1, H)),
      gru_w_ih=w(ks[8], (H, 3 * H)),       gru_b_ih=w(ks[9], (1, 3 * H)),
      gru_w_hh=w(ks[10], (H, 3 * H)),      gru_b_hh=w(ks[11], (1, 3 * H)),
  )


if __name__ == "__main__":
  key = jax.random.PRNGKey(0)
  N, E = 16, 40
  node_dim, edge_dim, hidden_dim, steps = 16, 8, 32, 6

  k_x, k_src, k_dst, k_ea, k_p = jax.random.split(key, 5)
  x = jax.random.normal(k_x, (N, node_dim), jnp.float32)
  src = jax.random.randint(k_src, (E,), 0, N)
  dst = jax.random.randint(k_dst, (E,), 0, N)
  edge_index = jnp.stack([src, dst])                    # (2, E), int32
  edge_attr = jax.random.normal(k_ea, (E, edge_dim), jnp.float32)

  params = init_params(k_p, hidden_dim, edge_dim, node_dim)

  # tile_e=16 -> 3 edge tiles (exercises the edge-reduction grid axis + padding)
  out = mpnn_forward(x, edge_index, edge_attr, params, hidden_dim, steps,
                     tile_e=16)
  out = jax.block_until_ready(out)
  assert out.shape == (N, hidden_dim) and out.dtype == jnp.float32
  assert bool(jnp.all(jnp.isfinite(out)))
  print("KERNEL_OK")
</pallas_src>

<mosaic_0001>
module attributes {stable_mosaic.version = 11 : i64} {
  func.func @mpnn_kernel(%arg0: i32, %arg1: i32, %arg2: memref<16x16xbf16, #tpu.memory_space<vmem>>, %arg3: memref<16x1xf32, #tpu.memory_space<vmem>>, %arg4: memref<16x32xbf16, #tpu.memory_space<vmem>>, %arg5: memref<1x32xf32, #tpu.memory_space<vmem>>, %arg6: memref<8x32xbf16, #tpu.memory_space<vmem>>, %arg7: memref<1x32xf32, #tpu.memory_space<vmem>>, %arg8: memref<32x1024xbf16, #tpu.memory_space<vmem>>, %arg9: memref<1x1024xf32, #tpu.memory_space<vmem>>, %arg10: memref<32x1024xbf16, #tpu.memory_space<vmem>>, %arg11: memref<1024x32xbf16, #tpu.memory_space<vmem>>, %arg12: memref<32x128xbf16, #tpu.memory_space<vmem>>, %arg13: memref<32x96xbf16, #tpu.memory_space<vmem>>, %arg14: memref<1x32xf32, #tpu.memory_space<vmem>>, %arg15: memref<1x32xf32, #tpu.memory_space<vmem>>, %arg16: memref<1x32xf32, #tpu.memory_space<vmem>>, %arg17: memref<1x32xf32, #tpu.memory_space<vmem>>, %arg18: memref<1x32xf32, #tpu.memory_space<vmem>>, %arg19: memref<16x1xi32, #tpu.memory_space<vmem>>, %arg20: memref<16x1xi32, #tpu.memory_space<vmem>>, %arg21: memref<16x8xbf16, #tpu.memory_space<vmem>>, %arg22: memref<16x32xf32, #tpu.memory_space<vmem>>, %arg23: memref<16x32xf32, #tpu.memory_space<vmem>>, %arg24: memref<16x32xf32, #tpu.memory_space<vmem>>) attributes {dimension_semantics = [#tpu.dimension_semantics<arbitrary>, #tpu.dimension_semantics<arbitrary>], iteration_bounds = array<i64: 6, 3>, scalar_prefetch = 0 : i64, scratch_operands = 2 : i64, tpu.core_type = #tpu.core_type<tc>, window_params = [{pipeline_mode = #tpu.pipeline_mode<synchronous>, transform_indices = @transform_0, window_bounds = array<i64: 16, 16>}, {pipeline_mode = #tpu.pipeline_mode<synchronous>, transform_indices = @transform_1, window_bounds = array<i64: 16, 1>}, {pipeline_mode = #tpu.pipeline_mode<synchronous>, transform_indices = @transform_2, window_bounds = array<i64: 16, 32>}, {pipeline_mode = #tpu.pipeline_mode<synchronous>, transform_indices = @transform_3, window_bounds = array<i64: 1, 32>}, {pipeline_mode = #tpu.pipeline_mode<synchronous>, transform_indices = @transform_4, window_bounds = array<i64: 8, 32>}, {pipeline_mode = #tpu.pipeline_mode<synchronous>, transform_indices = @transform_5, window_bounds = array<i64: 1, 32>}, {pipeline_mode = #tpu.pipeline_mode<synchronous>, transform_indices = @transform_6, window_bounds = array<i64: 32, 1024>}, {pipeline_mode = #tpu.pipeline_mode<synchronous>, transform_indices = @transform_7, window_bounds = array<i64: 1, 1024>}, {pipeline_mode = #tpu.pipeline_mode<synchronous>, transform_indices = @transform_8, window_bounds = array<i64: 32, 1024>}, {pipeline_mode = #tpu.pipeline_mode<synchronous>, transform_indices = @transform_9, window_bounds = array<i64: 1024, 32>}, {pipeline_mode = #tpu.pipeline_mode<synchronous>, transform_indices = @transform_10, window_bounds = array<i64: 32, 128>}, {pipeline_mode = #tpu.pipeline_mode<synchronous>, transform_indices = @transform_11, window_bounds = array<i64: 32, 96>}, {pipeline_mode = #tpu.pipeline_mode<synchronous>, transform_indices = @transform_12, window_bounds = array<i64: 1, 32>}, {pipeline_mode = #tpu.pipeline_mode<synchronous>, transform_indices = @transform_13, window_bounds = array<i64: 1, 32>}, {pipeline_mode = #tpu.pipeline_mode<synchronous>, transform_indices = @transform_14, window_bounds = array<i64: 1, 32>}, {pipeline_mode = #tpu.pipeline_mode<synchronous>, transform_indices = @transform_15, window_bounds = array<i64: 1, 32>}, {pipeline_mode = #tpu.pipeline_mode<synchronous>, transform_indices = @transform_16, window_bounds = array<i64: 1, 32>}, {transform_indices = @transform_17, window_bounds = array<i64: 16, 1>}, {transform_indices = @transform_18, window_bounds = array<i64: 16, 1>}, {transform_indices = @transform_19, window_bounds = array<i64: 16, 8>}, {pipeline_mode = #tpu.pipeline_mode<synchronous>, transform_indices = @transform_20, window_bounds = array<i64: 16, 32>}]} {
    %c0_i32 = arith.constant 0 : i32
    %0 = arith.cmpi eq, %arg0, %c0_i32 : i32
    %c0_i32_0 = arith.constant 0 : i32
    %1 = arith.cmpi eq, %arg1, %c0_i32_0 : i32
    %2 = arith.andi %0, %1 : i1
    %3 = arith.extui %2 : i1 to i32
    %c0_i32_1 = arith.constant 0 : i32
    %4 = arith.cmpi ne, %3, %c0_i32_1 : i32
    scf.if %4 {
      %c0_38 = arith.constant 0 : index
      %c0_39 = arith.constant 0 : index
      %55 = vector.load %arg2[%c0_38, %c0_39] : memref<16x16xbf16, #tpu.memory_space<vmem>>, vector<16x16xbf16>
      %c0_40 = arith.constant 0 : index
      %c0_41 = arith.constant 0 : index
      %56 = vector.load %arg4[%c0_40, %c0_41] : memref<16x32xbf16, #tpu.memory_space<vmem>>, vector<16x32xbf16>
      %cst_42 = arith.constant dense<0.000000e+00> : vector<16x32xf32>
      %57 = tpu.matmul %55, %56, %cst_42 {dimension_numbers = #tpu.dot_dimension_numbers<[1], [0], [0], [1], [0, 0, 1, 1], [], []>} : vector<16x16xbf16>, vector<16x32xbf16>, vector<16x32xf32> -> vector<16x32xf32>
      %c0_43 = arith.constant 0 : index
      %c0_44 = arith.constant 0 : index
      %58 = vector.load %arg5[%c0_43, %c0_44] : memref<1x32xf32, #tpu.memory_space<vmem>>, vector<1x32xf32>
      %59 = vector.broadcast %58 : vector<1x32xf32> to vector<16x32xf32>
      %60 = arith.addf %57, %59 : vector<16x32xf32>
      %cst_45 = arith.constant 0.000000e+00 : f32
      %61 = vector.broadcast %cst_45 : f32 to vector<16x32xf32>
      %62 = arith.maximumf %60, %61 : vector<16x32xf32>
      %c0_46 = arith.constant 0 : index
      %c0_47 = arith.constant 0 : index
      %63 = vector.load %arg23[%c0_46, %c0_47] : memref<16x32xf32, #tpu.memory_space<vmem>>, vector<16x32xf32>
      tpu.vector_store %arg23[%c0_46, %c0_47], %62 {strides = array<i32>} : memref<16x32xf32, #tpu.memory_space<vmem>>, vector<16x32xf32>,
    } else {
    }
    %c0_i32_2 = arith.constant 0 : i32
    %5 = arith.cmpi eq, %arg1, %c0_i32_2 : i32
    %6 = arith.extui %5 : i1 to i32
    %c0_i32_3 = arith.constant 0 : i32
    %7 = arith.cmpi ne, %6, %c0_i32_3 : i32
    scf.if %7 {
      %cst_38 = arith.constant 0.000000e+00 : f32
      %55 = vector.broadcast %cst_38 : f32 to vector<16x32xf32>
      %c0_39 = arith.constant 0 : index
      %c0_40 = arith.constant 0 : index
      %56 = vector.load %arg24[%c0_39, %c0_40] : memref<16x32xf32, #tpu.memory_space<vmem>>, vector<16x32xf32>
      tpu.vector_store %arg24[%c0_39, %c0_40], %55 {strides = array<i32>} : memref<16x32xf32, #tpu.memory_space<vmem>>, vector<16x32xf32>,
    } else {
    }
    %c0 = arith.constant 0 : index
    %c0_4 = arith.constant 0 : index
    %8 = vector.load %arg23[%c0, %c0_4] : memref<16x32xf32, #tpu.memory_space<vmem>>, vector<16x32xf32>
    %9 = arith.truncf %8 : vector<16x32xf32> to vector<16x32xbf16>
    %10 = tpu.iota {dimensions = array<i32: 1>} : vector<16x16xi32>
    %c0_5 = arith.constant 0 : index
    %c0_6 = arith.constant 0 : index
    %11 = vector.load %arg19[%c0_5, %c0_6] : memref<16x1xi32, #tpu.memory_space<vmem>>, vector<16x1xi32>
    %12 = vector.broadcast %11 : vector<16x1xi32> to vector<16x16xi32>
    %13 = arith.cmpi eq, %10, %12 : vector<16x16xi32>
    %cst = arith.constant 1.000000e+00 : f32
    %cst_7 = arith.constant 0.000000e+00 : f32
    %14 = vector.broadcast %cst : f32 to vector<16x16xf32>
    %15 = vector.broadcast %cst_7 : f32 to vector<16x16xf32>
    %16 = arith.select %13, %14, %15 : vector<16x16xi1>, vector<16x16xf32>
    %17 = arith.truncf %16 : vector<16x16xf32> to vector<16x16xbf16>
    %c0_8 = arith.constant 0 : index
    %c0_9 = arith.constant 0 : index
    %18 = vector.load %arg20[%c0_8, %c0_9] : memref<16x1xi32, #tpu.memory_space<vmem>>, vector<16x1xi32>
    %19 = vector.broadcast %18 : vector<16x1xi32> to vector<16x16xi32>
    %20 = arith.cmpi eq, %10, %19 : vector<16x16xi32>
    %cst_10 = arith.constant 1.000000e+00 : f32
    %cst_11 = arith.constant 0.000000e+00 : f32
    %21 = vector.broadcast %cst_10 : f32 to vector<16x16xf32>
    %22 = vector.broadcast %cst_11 : f32 to vector<16x16xf32>
    %23 = arith.select %20, %21, %22 : vector<16x16xi1>, vector<16x16xf32>
    %24 = arith.truncf %23 : vector<16x16xf32> to vector<16x16xbf16>
    %c0_12 = arith.constant 0 : index
    %c0_13 = arith.constant 0 : index
    %25 = vector.load %arg21[%c0_12, %c0_13] : memref<16x8xbf16, #tpu.memory_space<vmem>>, vector<16x8xbf16>
    %c0_14 = arith.constant 0 : index
    %c0_15 = arith.constant 0 : index
    %26 = vector.load %arg6[%c0_14, %c0_15] : memref<8x32xbf16, #tpu.memory_space<vmem>>, vector<8x32xbf16>
    %cst_16 = arith.constant dense<0.000000e+00> : vector<16x32xf32>
    %27 = tpu.matmul %25, %26, %cst_16 {dimension_numbers = #tpu.dot_dimension_numbers<[1], [0], [0], [1], [0, 0, 1, 1], [], []>} : vector<16x8xbf16>, vector<8x32xbf16>, vector<16x32xf32> -> vector<16x32xf32>
    %c0_17 = arith.constant 0 : index
    %c0_18 = arith.constant 0 : index
    %28 = vector.load %arg7[%c0_17, %c0_18] : memref<1x32xf32, #tpu.memory_space<vmem>>, vector<1x32xf32>
    %29 = vector.broadcast %28 : vector<1x32xf32> to vector<16x32xf32>
    %30 = arith.addf %27, %29 : vector<16x32xf32>
    %cst_19 = arith.constant 0.000000e+00 : f32
    %31 = vector.broadcast %cst_19 : f32 to vector<16x32xf32>
    %32 = arith.maximumf %30, %31 : vector<16x32xf32>
    %33 = arith.truncf %32 : vector<16x32xf32> to vector<16x32xbf16>
    %c0_20 = arith.constant 0 : index
    %c0_21 = arith.constant 0 : index
    %34 = vector.load %arg8[%c0_20, %c0_21] : memref<32x1024xbf16, #tpu.memory_space<vmem>>, vector<32x1024xbf16>
    %cst_22 = arith.constant dense<0.000000e+00> : vector<16x1024xf32>
    %35 = tpu.matmul %33, %34, %cst_22 {dimension_numbers = #tpu.dot_dimension_numbers<[1], [0], [0], [1], [0, 0, 1, 1], [], []>} : vector<16x32xbf16>, vector<32x1024xbf16>, vector<16x1024xf32> -> vector<16x1024xf32>
    %c0_23 = arith.constant 0 : index
    %c0_24 = arith.constant 0 : index
    %36 = vector.load %arg9[%c0_23, %c0_24] : memref<1x1024xf32, #tpu.memory_space<vmem>>, vector<1x1024xf32>
    %37 = vector.broadcast %36 : vector<1x1024xf32> to vector<16x1024xf32>
    %38 = arith.addf %35, %37 : vector<16x1024xf32>
    %cst_25 = arith.constant dense<0.000000e+00> : vector<16x32xf32>
    %39 = tpu.matmul %17, %9, %cst_25 {dimension_numbers = #tpu.dot_dimension_numbers<[1], [0], [0], [1], [0, 0, 1, 1], [], []>} : vector<16x16xbf16>, vector<16x32xbf16>, vector<16x32xf32> -> vector<16x32xf32>
    %40 = arith.truncf %39 : vector<16x32xf32> to vector<16x32xbf16>
    %c0_26 = arith.constant 0 : index
    %c0_27 = arith.constant 0 : index
    %41 = vector.load %arg10[%c0_26, %c0_27] : memref<32x1024xbf16, #tpu.memory_space<vmem>>, vector<32x1024xbf16>
    %cst_28 = arith.constant dense<0.000000e+00> : vector<16x1024xf32>
    %42 = tpu.matmul %40, %41, %cst_28 {dimension_numbers = #tpu.dot_dimension_numbers<[1], [0], [0], [1], [0, 0, 1, 1], [], []>} : vector<16x32xbf16>, vector<32x1024xbf16>, vector<16x1024xf32> -> vector<16x1024xf32>
    %43 = arith.mulf %42, %38 : vector<16x1024xf32>
    %44 = arith.truncf %43 : vector<16x1024xf32> to vector<16x1024xbf16>
    %c0_29 = arith.constant 0 : index
    %c0_30 = arith.constant 0 : index
    %45 = vector.load %arg11[%c0_29, %c0_30] : memref<1024x32xbf16, #tpu.memory_space<vmem>>, vector<1024x32xbf16>
    %cst_31 = arith.constant dense<0.000000e+00> : vector<16x32xf32>
    %46 = tpu.matmul %44, %45, %cst_31 {dimension_numbers = #tpu.dot_dimension_numbers<[1], [0], [0], [1], [0, 0, 1, 1], [], []>} : vector<16x1024xbf16>, vector<1024x32xbf16>, vector<16x32xf32> -> vector<16x32xf32>
    %c0_32 = arith.constant 0 : index
    %c0_33 = arith.constant 0 : index
    %47 = vector.load %arg24[%c0_32, %c0_33] : memref<16x32xf32, #tpu.memory_space<vmem>>, vector<16x32xf32>
    %48 = arith.truncf %46 : vector<16x32xf32> to vector<16x32xbf16>
    %cst_34 = arith.constant dense<0.000000e+00> : vector<16x32xf32>
    %49 = tpu.matmul %24, %48, %cst_34 {dimension_numbers = #tpu.dot_dimension_numbers<[0], [0], [1], [1], [0, 1, 1, 1], [], []>} : vector<16x16xbf16>, vector<16x32xbf16>, vector<16x32xf32> -> vector<16x32xf32>
    %50 = arith.addf %47, %49 : vector<16x32xf32>
    %c0_35 = arith.constant 0 : index
    %c0_36 = arith.constant 0 : index
    %51 = vector.load %arg24[%c0_35, %c0_36] : memref<16x32xf32, #tpu.memory_space<vmem>>, vector<16x32xf32>
    tpu.vector_store %arg24[%c0_35, %c0_36], %50 {strides = array<i32>} : memref<16x32xf32, #tpu.memory_space<vmem>>, vector<16x32xf32>,
    %c2_i32 = arith.constant 2 : i32
    %52 = arith.cmpi eq, %arg1, %c2_i32 : i32
    %53 = arith.extui %52 : i1 to i32
    %c0_i32_37 = arith.constant 0 : i32
    %54 = arith.cmpi ne, %53, %c0_i32_37 : i32
    scf.if %54 {
      %c0_38 = arith.constant 0 : index
      %c0_39 = arith.constant 0 : index
      %55 = vector.load %arg24[%c0_38, %c0_39] : memref<16x32xf32, #tpu.memory_space<vmem>>, vector<16x32xf32>
      %c0_40 = arith.constant 0 : index
      %c0_41 = arith.constant 0 : index
      %56 = vector.load %arg3[%c0_40, %c0_41] : memref<16x1xf32, #tpu.memory_space<vmem>>, vector<16x1xf32>
      %57 = vector.broadcast %56 : vector<16x1xf32> to vector<16x32xf32>
      %58 = arith.mulf %55, %57 : vector<16x32xf32>
      %c0_42 = arith.constant 0 : index
      %c0_43 = arith.constant 0 : index
      %59 = vector.load %arg12[%c0_42, %c0_43] : memref<32x128xbf16, #tpu.memory_space<vmem>>, vector<32x128xbf16>
      %cst_44 = arith.constant dense<0.000000e+00> : vector<16x128xf32>
      %60 = tpu.matmul %9, %59, %cst_44 {dimension_numbers = #tpu.dot_dimension_numbers<[1], [0], [0], [1], [0, 0, 1, 1], [], []>} : vector<16x32xbf16>, vector<32x128xbf16>, vector<16x128xf32> -> vector<16x128xf32>
      %61 = vector.extract_strided_slice %60 {offsets = [0, 0], sizes = [16, 32], strides = [1, 1]} : vector<16x128xf32> to vector<16x32xf32>
      %62 = arith.addf %58, %61 : vector<16x32xf32>
      %c0_45 = arith.constant 0 : index
      %c0_46 = arith.constant 0 : index
      %63 = vector.load %arg14[%c0_45, %c0_46] : memref<1x32xf32, #tpu.memory_space<vmem>>, vector<1x32xf32>
      %64 = vector.broadcast %63 : vector<1x32xf32> to vector<16x32xf32>
      %65 = arith.addf %62, %64 : vector<16x32xf32>
      %cst_47 = arith.constant 0.000000e+00 : f32
      %66 = vector.broadcast %cst_47 : f32 to vector<16x32xf32>
      %67 = arith.maximumf %65, %66 : vector<16x32xf32>
      %68 = arith.truncf %67 : vector<16x32xf32> to vector<16x32xbf16>
      %c0_48 = arith.constant 0 : index
      %c0_49 = arith.constant 0 : index
      %69 = vector.load %arg13[%c0_48, %c0_49] : memref<32x96xbf16, #tpu.memory_space<vmem>>, vector<32x96xbf16>
      %cst_50 = arith.constant dense<0.000000e+00> : vector<16x96xf32>
      %70 = tpu.matmul %68, %69, %cst_50 {dimension_numbers = #tpu.dot_dimension_numbers<[1], [0], [0], [1], [0, 0, 1, 1], [], []>} : vector<16x32xbf16>, vector<32x96xbf16>, vector<16x96xf32> -> vector<16x96xf32>
      %71 = vector.extract_strided_slice %70 {offsets = [0, 0], sizes = [16, 32], strides = [1, 1]} : vector<16x96xf32> to vector<16x32xf32>
      %72 = vector.extract_strided_slice %60 {offsets = [0, 32], sizes = [16, 32], strides = [1, 1]} : vector<16x128xf32> to vector<16x32xf32>
      %73 = arith.addf %71, %72 : vector<16x32xf32>
      %c0_51 = arith.constant 0 : index
      %c0_52 = arith.constant 0 : index
      %74 = vector.load %arg15[%c0_51, %c0_52] : memref<1x32xf32, #tpu.memory_space<vmem>>, vector<1x32xf32>
      %75 = vector.broadcast %74 : vector<1x32xf32> to vector<16x32xf32>
      %76 = arith.addf %73, %75 : vector<16x32xf32>
      %77 = arith.negf %76 : vector<16x32xf32>
      %78 = math.exp %77 : vector<16x32xf32>
      %cst_53 = arith.constant 1.000000e+00 : f32
      %79 = vector.broadcast %cst_53 : f32 to vector<16x32xf32>
      %80 = arith.addf %79, %78 : vector<16x32xf32>
      %81 = arith.divf %79, %80 : vector<16x32xf32>
      %82 = vector.extract_strided_slice %70 {offsets = [0, 32], sizes = [16, 32], strides = [1, 1]} : vector<16x96xf32> to vector<16x32xf32>
      %83 = vector.extract_strided_slice %60 {offsets = [0, 64], sizes = [16, 32], strides = [1, 1]} : vector<16x128xf32> to vector<16x32xf32>
      %84 = arith.addf %82, %83 : vector<16x32xf32>
      %c0_54 = arith.constant 0 : index
      %c0_55 = arith.constant 0 : index
      %85 = vector.load %arg16[%c0_54, %c0_55] : memref<1x32xf32, #tpu.memory_space<vmem>>, vector<1x32xf32>
      %86 = vector.broadcast %85 : vector<1x32xf32> to vector<16x32xf32>
      %87 = arith.addf %84, %86 : vector<16x32xf32>
      %88 = arith.negf %87 : vector<16x32xf32>
      %89 = math.exp %88 : vector<16x32xf32>
      %cst_56 = arith.constant 1.000000e+00 : f32
      %90 = vector.broadcast %cst_56 : f32 to vector<16x32xf32>
      %91 = arith.addf %90, %89 : vector<16x32xf32>
      %92 = arith.divf %90, %91 : vector<16x32xf32>
      %93 = vector.extract_strided_slice %70 {offsets = [0, 64], sizes = [16, 32], strides = [1, 1]} : vector<16x96xf32> to vector<16x32xf32>
      %c0_57 = arith.constant 0 : index
      %c0_58 = arith.constant 0 : index
      %94 = vector.load %arg17[%c0_57, %c0_58] : memref<1x32xf32, #tpu.memory_space<vmem>>, vector<1x32xf32>
      %95 = vector.broadcast %94 : vector<1x32xf32> to vector<16x32xf32>
      %96 = arith.addf %93, %95 : vector<16x32xf32>
      %97 = vector.extract_strided_slice %60 {offsets = [0, 96], sizes = [16, 32], strides = [1, 1]} : vector<16x128xf32> to vector<16x32xf32>
      %c0_59 = arith.constant 0 : index
      %c0_60 = arith.constant 0 : index
      %98 = vector.load %arg18[%c0_59, %c0_60] : memref<1x32xf32, #tpu.memory_space<vmem>>, vector<1x32xf32>
      %99 = vector.broadcast %98 : vector<1x32xf32> to vector<16x32xf32>
      %100 = arith.addf %97, %99 : vector<16x32xf32>
      %101 = arith.mulf %81, %100 : vector<16x32xf32>
      %102 = arith.addf %96, %101 : vector<16x32xf32>
      %103 = math.tanh %102 : vector<16x32xf32>
      %cst_61 = arith.constant 1.000000e+00 : f32
      %104 = vector.broadcast %cst_61 : f32 to vector<16x32xf32>
      %105 = arith.subf %104, %92 : vector<16x32xf32>
      %106 = arith.mulf %105, %103 : vector<16x32xf32>
      %107 = arith.mulf %92, %8 : vector<16x32xf32>
      %108 = arith.addf %106, %107 : vector<16x32xf32>
      %c0_62 = arith.constant 0 : index
      %c0_63 = arith.constant 0 : index
      %109 = vector.load %arg23[%c0_62, %c0_63] : memref<16x32xf32, #tpu.memory_space<vmem>>, vector<16x32xf32>
      tpu.vector_store %arg23[%c0_62, %c0_63], %108 {strides = array<i32>} : memref<16x32xf32, #tpu.memory_space<vmem>>, vector<16x32xf32>,
      %c0_64 = arith.constant 0 : index
      %c0_65 = arith.constant 0 : index
      %110 = vector.load %arg22[%c0_64, %c0_65] : memref<16x32xf32, #tpu.memory_space<vmem>>, vector<16x32xf32>
      tpu.vector_store %arg22[%c0_64, %c0_65], %108 {strides = array<i32>} : memref<16x32xf32, #tpu.memory_space<vmem>>, vector<16x32xf32>,
    } else {
    }
    return
  }
  func.func @transform_0(%arg0: i32, %arg1: i32) -> (i32, i32) {
    %c0_i32 = arith.constant 0 : i32
    %c0_i32_0 = arith.constant 0 : i32
    %c0_i32_1 = arith.constant 0 : i32
    return %c0_i32, %c0_i32_0 : i32, i32
  }
  func.func @transform_1(%arg0: i32, %arg1: i32) -> (i32, i32) {
    %c0_i32 = arith.constant 0 : i32
    %c0_i32_0 = arith.constant 0 : i32
    %c0_i32_1 = arith.constant 0 : i32
    return %c0_i32, %c0_i32_0 : i32, i32
  }
  func.func @transform_2(%arg0: i32, %arg1: i32) -> (i32, i32) {
    %c0_i32 = arith.constant 0 : i32
    %c0_i32_0 = arith.constant 0 : i32
    %c0_i32_1 = arith.constant 0 : i32
    return %c0_i32, %c0_i32_0 : i32, i32
  }
  func.func @transform_3(%arg0: i32, %arg1: i32) -> (i32, i32) {
    %c0_i32 = arith.constant 0 : i32
    %c0_i32_0 = arith.constant 0 : i32
    %c0_i32_1 = arith.constant 0 : i32
    return %c0_i32, %c0_i32_0 : i32, i32
  }
  func.func @transform_4(%arg0: i32, %arg1: i32) -> (i32, i32) {
    %c0_i32 = arith.constant 0 : i32
    %c0_i32_0 = arith.constant 0 : i32
    %c0_i32_1 = arith.constant 0 : i32
    return %c0_i32, %c0_i32_0 : i32, i32
  }
  func.func @transform_5(%arg0: i32, %arg1: i32) -> (i32, i32) {
    %c0_i32 = arith.constant 0 : i32
    %c0_i32_0 = arith.constant 0 : i32
    %c0_i32_1 = arith.constant 0 : i32
    return %c0_i32, %c0_i32_0 : i32, i32
  }
  func.func @transform_6(%arg0: i32, %arg1: i32) -> (i32, i32) {
    %c0_i32 = arith.constant 0 : i32
    %c0_i32_0 = arith.constant 0 : i32
    %c0_i32_1 = arith.constant 0 : i32
    return %c0_i32, %c0_i32_0 : i32, i32
  }
  func.func @transform_7(%arg0: i32, %arg1: i32) -> (i32, i32) {
    %c0_i32 = arith.constant 0 : i32
    %c0_i32_0 = arith.constant 0 : i32
    %c0_i32_1 = arith.constant 0 : i32
    return %c0_i32, %c0_i32_0 : i32, i32
  }
  func.func @transform_8(%arg0: i32, %arg1: i32) -> (i32, i32) {
    %c0_i32 = arith.constant 0 : i32
    %c0_i32_0 = arith.constant 0 : i32
    %c0_i32_1 = arith.constant 0 : i32
    return %c0_i32, %c0_i32_0 : i32, i32
  }
  func.func @transform_9(%arg0: i32, %arg1: i32) -> (i32, i32) {
    %c0_i32 = arith.constant 0 : i32
    %c0_i32_0 = arith.constant 0 : i32
    %c0_i32_1 = arith.constant 0 : i32
    return %c0_i32, %c0_i32_0 : i32, i32
  }
  func.func @transform_10(%arg0: i32, %arg1: i32) -> (i32, i32) {
    %c0_i32 = arith.constant 0 : i32
    %c0_i32_0 = arith.constant 0 : i32
    %c0_i32_1 = arith.constant 0 : i32
    return %c0_i32, %c0_i32_0 : i32, i32
  }
  func.func @transform_11(%arg0: i32, %arg1: i32) -> (i32, i32) {
    %c0_i32 = arith.constant 0 : i32
    %c0_i32_0 = arith.constant 0 : i32
    %c0_i32_1 = arith.constant 0 : i32
    return %c0_i32, %c0_i32_0 : i32, i32
  }
  func.func @transform_12(%arg0: i32, %arg1: i32) -> (i32, i32) {
    %c0_i32 = arith.constant 0 : i32
    %c0_i32_0 = arith.constant 0 : i32
    %c0_i32_1 = arith.constant 0 : i32
    return %c0_i32, %c0_i32_0 : i32, i32
  }
  func.func @transform_13(%arg0: i32, %arg1: i32) -> (i32, i32) {
    %c0_i32 = arith.constant 0 : i32
    %c0_i32_0 = arith.constant 0 : i32
    %c0_i32_1 = arith.constant 0 : i32
    return %c0_i32, %c0_i32_0 : i32, i32
  }
  func.func @transform_14(%arg0: i32, %arg1: i32) -> (i32, i32) {
    %c0_i32 = arith.constant 0 : i32
    %c0_i32_0 = arith.constant 0 : i32
    %c0_i32_1 = arith.constant 0 : i32
    return %c0_i32, %c0_i32_0 : i32, i32
  }
  func.func @transform_15(%arg0: i32, %arg1: i32) -> (i32, i32) {
    %c0_i32 = arith.constant 0 : i32
    %c0_i32_0 = arith.constant 0 : i32
    %c0_i32_1 = arith.constant 0 : i32
    return %c0_i32, %c0_i32_0 : i32, i32
  }
  func.func @transform_16(%arg0: i32, %arg1: i32) -> (i32, i32) {
    %c0_i32 = arith.constant 0 : i32
    %c0_i32_0 = arith.constant 0 : i32
    %c0_i32_1 = arith.constant 0 : i32
    return %c0_i32, %c0_i32_0 : i32, i32
  }
  func.func @transform_17(%arg0: i32, %arg1: i32) -> (i32, i32) {
    %c0_i32 = arith.constant 0 : i32
    %c0_i32_0 = arith.constant 0 : i32
    return %arg1, %c0_i32 : i32, i32
  }
  func.func @transform_18(%arg0: i32, %arg1: i32) -> (i32, i32) {
    %c0_i32 = arith.constant 0 : i32
    %c0_i32_0 = arith.constant 0 : i32
    return %arg1, %c0_i32 : i32, i32
  }
  func.func @transform_19(%arg0: i32, %arg1: i32) -> (i32, i32) {
    %c0_i32 = arith.constant 0 : i32
    %c0_i32_0 = arith.constant 0 : i32
    return %arg1, %c0_i32 : i32, i32
  }
  func.func @transform_20(%arg0: i32, %arg1: i32) -> (i32, i32) {
    %c0_i32 = arith.constant 0 : i32
    %c0_i32_0 = arith.constant 0 : i32
    %c0_i32_1 = arith.constant 0 : i32
    return %c0_i32, %c0_i32_0 : i32, i32
  }
}

</mosaic_0001>

<llo_original>
// kernel: tpu_custom_call.1
$region0: #{tpu_custom_call.1}
  #allocation0 [shape = 'u32[]', space=smem, size = 0x4, offset = 0x4, fixed_abs, tag = 'smem constant byte address 0x4 - core index']
  #allocation1 [shape = 'u32[72,128]{1,0:T(1,128)}', space=vmem, size = 0x9000, scoped, tag = 'internal scratch']
  #allocation2 [shape = 'f32[16,32]{1,0:T(8,128)}', space=vmem, size = 0x2000, scoped, tag = 'scratch operand']
  #allocation3 [shape = 'f32[16,32]{1,0:T(8,128)}', space=vmem, size = 0x2000, scoped, tag = 'scratch operand']
  %s0 = inlined_call_operand.vmem [shape: bf16[16,16], index: 0, kind: input, shape index: {}]
  %s1 = inlined_call_operand.vmem [shape: f32[16,1], index: 1, kind: input, shape index: {}]
  %s2 = inlined_call_operand.vmem [shape: bf16[16,32], index: 2, kind: input, shape index: {}]
  %s3 = inlined_call_operand.vmem [shape: f32[1,32], index: 3, kind: input, shape index: {}]
  %s4 = inlined_call_operand.vmem [shape: bf16[8,32], index: 4, kind: input, shape index: {}]
  %s5 = inlined_call_operand.vmem [shape: f32[1,32], index: 5, kind: input, shape index: {}]
  %s6 = inlined_call_operand.vmem [shape: bf16[32,1024], index: 6, kind: input, shape index: {}]
  %s7 = inlined_call_operand.vmem [shape: f32[1,1024], index: 7, kind: input, shape index: {}]
  %s8 = inlined_call_operand.vmem [shape: bf16[32,1024], index: 8, kind: input, shape index: {}]
  %s9 = inlined_call_operand.vmem [shape: bf16[1024,32], index: 9, kind: input, shape index: {}]
  %s10 = inlined_call_operand.vmem [shape: bf16[32,128], index: 10, kind: input, shape index: {}]
  %s11 = inlined_call_operand.vmem [shape: bf16[32,96], index: 11, kind: input, shape index: {}]
  %s12 = inlined_call_operand.vmem [shape: f32[1,32], index: 12, kind: input, shape index: {}]
  %s13 = inlined_call_operand.vmem [shape: f32[1,32], index: 13, kind: input, shape index: {}]
  %s14 = inlined_call_operand.vmem [shape: f32[1,32], index: 14, kind: input, shape index: {}]
  %s15 = inlined_call_operand.vmem [shape: f32[1,32], index: 15, kind: input, shape index: {}]
  %s16 = inlined_call_operand.vmem [shape: f32[1,32], index: 16, kind: input, shape index: {}]
  %s17 = inlined_call_operand.vmem [shape: s32[48,1], index: 17, kind: input, shape index: {}]
  %s18 = inlined_call_operand.vmem [shape: s32[48,1], index: 18, kind: input, shape index: {}]
  %s19 = inlined_call_operand.vmem [shape: bf16[48,8], index: 19, kind: input, shape index: {}]
  %s20 = inlined_call_operand.hbm [shape: f32[16,32], index: 20, kind: output, shape index: {}]
  %s21 = sld [smem:[#allocation0]]
  $region125: #{tpu_custom_call.1} parent=0
    _
  %s23 = ssub.s32 1, %s21
  %s24 = scalar_select 0, %s23, %s21
  $region1: #{tpu_custom_call.1} parent=0
    #allocation4 [shape = 'u8[8192]{0}', space=vmem, size = 0x2000, scoped, tag = 'output window, operand 0, single buffered']
    #allocation5 [shape = 's32[2]{0}', space=sflag, size = 0x8, scoped, tag = 'scoped memory for tpu_custom_call.1']
    %25 = vsyncpa [#allocation5], 0
    loop: start=0, step=1, limit=20
    $region2: #{tpu_custom_call.1} parent=1 // loop_pre_header
      _
    $region3: #{tpu_custom_call.1} parent=1 // loop_header
      %s27 = sphi 0, %s31
      %p28 = scmp.ge.s32.totalorder %s27, 20
      %s34 = sphi 0, %s46
      %s35 = sphi 0, %s42
      %s36 = sphi 0, %s34
      %s37 = sphi 0, %s35
      %s38 = sphi 0, %s36
      %s39 = sphi 0, %s37
      %s47 = sphi 0, %s47
      %s49 = sphi 0, %s47
      %s50 = sphi 0, %s49
      %s64 = sphi 0, %s50
      %s68 = sphi 0, %s68
      %s70 = sphi 0, %s68
      %s71 = sphi 0, %s70
      %s85 = sphi 0, %s71
      %s89 = sphi 0, %s89
      %s91 = sphi 0, %s89
      %s92 = sphi 0, %s91
      %s106 = sphi 0, %s92
      %s110 = sphi 0, %s110
      %s112 = sphi 0, %s110
      %s113 = sphi 0, %s112
      %s127 = sphi 0, %s113
      %s131 = sphi 0, %s131
      %s133 = sphi 0, %s131
      %s134 = sphi 0, %s133
      %s148 = sphi 0, %s134
      %s152 = sphi 0, %s152
      %s154 = sphi 0, %s152
      %s155 = sphi 0, %s154
      %s169 = sphi 0, %s155
      %s173 = sphi 0, %s173
      %s175 = sphi 0, %s173
      %s176 = sphi 0, %s175
      %s190 = sphi 0, %s176
      %s194 = sphi 0, %s194
      %s196 = sphi 0, %s194
      %s197 = sphi 0, %s196
      %s211 = sphi 0, %s197
      %s215 = sphi 0, %s215
      %s217 = sphi 0, %s215
      %s218 = sphi 0, %s217
      %s232 = sphi 0, %s218
      %s236 = sphi 0, %s236
      %s238 = sphi 0, %s236
      %s239 = sphi 0, %s238
      %s253 = sphi 0, %s239
      %s257 = sphi 0, %s257
      %s259 = sphi 0, %s257
      %s260 = sphi 0, %s259
      %s274 = sphi 0, %s260
      %s278 = sphi 0, %s278
      %s280 = sphi 0, %s278
      %s281 = sphi 0, %s280
      %s295 = sphi 0, %s281
      %s299 = sphi 0, %s299
      %s301 = sphi 0, %s299
      %s302 = sphi 0, %s301
      %s316 = sphi 0, %s302
      %s320 = sphi 0, %s320
      %s322 = sphi 0, %s320
      %s323 = sphi 0, %s322
      %s337 = sphi 0, %s323
      %s341 = sphi 0, %s341
      %s343 = sphi 0, %s341
      %s344 = sphi 0, %s343
      %s358 = sphi 0, %s344
      %s362 = sphi 0, %s362
      %s364 = sphi 0, %s362
      %s365 = sphi 0, %s364
      %s379 = sphi 0, %s365
      %s383 = sphi 0, %s383
      %s385 = sphi 0, %s383
      %s386 = sphi 0, %s385
      %s400 = sphi 0, %s386
      %s406 = sphi 0, %s408
      %s409 = sphi 0, %s406
      %s410 = sphi 0, %s409
      %s426 = sphi 0, %s410
      %s432 = sphi 0, %s434
      %s435 = sphi 0, %s432
      %s436 = sphi 0, %s435
      %s452 = sphi 0, %s436
      %s458 = sphi 0, %s460
      %s461 = sphi 0, %s458
      %s462 = sphi 0, %s461
      %s478 = sphi 0, %s462
      %s482 = sphi 0, %s482
      %s484 = sphi 0, %s482
      %s485 = sphi 0, %s484
      %s499 = sphi 0, %s485
    $region4: #{tpu_custom_call.1} parent=1 // loop_header_branch
      %30 = sbr.rel (%p28) target = $region8
    $region5: #{tpu_custom_call.1} parent=1 // loop_body
      %s32 = ssub.s32 %s27, 1
      %s33 = ssub.s32 %s27, 2
      %s40 = sadd.s32 1, %s35
      %p41 = scmp.ge.s32.totalorder %s40, 3
      %s42 = scalar_select %p41, 0, %s40
      %s43 = sadd.s32 1, %s34
      %s44 = scalar_select %p41, %s43, %s34
      %p45 = scmp.ge.s32.totalorder %s44, 6
      %s46 = scalar_select %p45, 0, %s44
      %s48 = sadd.s32 %s47, 1
      %p51 = scmp.eq.s32.totalorder %s27, 17
      %p52 = scmp.ne.s32.totalorder %s47, %s49
      %p53 = scmp.eq.s32.totalorder %s27, 0
      %p54 = por %p52, %p53
      %p55 = scmp.ne.s32.totalorder %s47, %s49
      %p56 = scmp.eq.s32.totalorder %s32, 17
      %p57 = por %p55, %p56
      %p58 = scmp.ne.s32.totalorder %s49, %s50
      %p59 = scmp.eq.s32.totalorder %s32, 0
      %p60 = por %p58, %p59
      %p61 = scmp.ne.s32.totalorder %s49, %s50
      %p62 = scmp.eq.s32.totalorder %s33, 17
      %p63 = por %p61, %p62
      %p65 = scmp.ne.s32.totalorder %s50, %s64
      %p66 = scmp.eq.s32.totalorder %s33, 0
      %p67 = por %p65, %p66
      %s69 = sadd.s32 %s68, 1
      %p72 = scmp.eq.s32.totalorder %s27, 17
      %p73 = scmp.ne.s32.totalorder %s68, %s70
      %p74 = scmp.eq.s32.totalorder %s27, 0
      %p75 = por %p73, %p74
      %p76 = scmp.ne.s32.totalorder %s68, %s70
      %p77 = scmp.eq.s32.totalorder %s32, 17
      %p78 = por %p76, %p77
      %p79 = scmp.ne.s32.totalorder %s70, %s71
      %p80 = scmp.eq.s32.totalorder %s32, 0
      %p81 = por %p79, %p80
      %p82 = scmp.ne.s32.totalorder %s70, %s71
      %p83 = scmp.eq.s32.totalorder %s33, 17
      %p84 = por %p82, %p83
      %p86 = scmp.ne.s32.totalorder %s71, %s85
      %p87 = scmp.eq.s32.totalorder %s33, 0
      %p88 = por %p86, %p87
      %s90 = sadd.s32 %s89, 1
      %p93 = scmp.eq.s32.totalorder %s27, 17
      %p94 = scmp.ne.s32.totalorder %s89, %s91
      %p95 = scmp.eq.s32.totalorder %s27, 0
      %p96 = por %p94, %p95
      %p97 = scmp.ne.s32.totalorder %s89, %s91
      %p98 = scmp.eq.s32.totalorder %s32, 17
      %p99 = por %p97, %p98
      %p100 = scmp.ne.s32.totalorder %s91, %s92
      %p101 = scmp.eq.s32.totalorder %s32, 0
      %p102 = por %p100, %p101
      %p103 = scmp.ne.s32.totalorder %s91, %s92
      %p104 = scmp.eq.s32.totalorder %s33, 17
      %p105 = por %p103, %p104
      %p107 = scmp.ne.s32.totalorder %s92, %s106
      %p108 = scmp.eq.s32.totalorder %s33, 0
      %p109 = por %p107, %p108
      %s111 = sadd.s32 %s110, 1
      %p114 = scmp.eq.s32.totalorder %s27, 17
      %p115 = scmp.ne.s32.totalorder %s110, %s112
      %p116 = scmp.eq.s32.totalorder %s27, 0
      %p117 = por %p115, %p116
      %p118 = scmp.ne.s32.totalorder %s110, %s112
      %p119 = scmp.eq.s32.totalorder %s32, 17
      %p120 = por %p118, %p119
      %p121 = scmp.ne.s32.totalorder %s112, %s113
      %p122 = scmp.eq.s32.totalorder %s32, 0
      %p123 = por %p121, %p122
      %p124 = scmp.ne.s32.totalorder %s112, %s113
      %p125 = scmp.eq.s32.totalorder %s33, 17
      %p126 = por %p124, %p125
      %p128 = scmp.ne.s32.totalorder %s113, %s127
      %p129 = scmp.eq.s32.totalorder %s33, 0
      %p130 = por %p128, %p129
      %s132 = sadd.s32 %s131, 1
      %p135 = scmp.eq.s32.totalorder %s27, 17
      %p136 = scmp.ne.s32.totalorder %s131, %s133
      %p137 = scmp.eq.s32.totalorder %s27, 0
      %p138 = por %p136, %p137
      %p139 = scmp.ne.s32.totalorder %s131, %s133
      %p140 = scmp.eq.s32.totalorder %s32, 17
      %p141 = por %p139, %p140
      %p142 = scmp.ne.s32.totalorder %s133, %s134
      %p143 = scmp.eq.s32.totalorder %s32, 0
      %p144 = por %p142, %p143
      %p145 = scmp.ne.s32.totalorder %s133, %s134
      %p146 = scmp.eq.s32.totalorder %s33, 17
      %p147 = por %p145, %p146
      %p149 = scmp.ne.s32.totalorder %s134, %s148
      %p150 = scmp.eq.s32.totalorder %s33, 0
      %p151 = por %p149, %p150
      %s153 = sadd.s32 %s152, 1
      %p156 = scmp.eq.s32.totalorder %s27, 17
      %p157 = scmp.ne.s32.totalorder %s152, %s154
      %p158 = scmp.eq.s32.totalorder %s27, 0
      %p159 = por %p157, %p158
      %p160 = scmp.ne.s32.totalorder %s152, %s154
      %p161 = scmp.eq.s32.totalorder %s32, 17
      %p162 = por %p160, %p161
      %p163 = scmp.ne.s32.totalorder %s154, %s155
      %p164 = scmp.eq.s32.totalorder %s32, 0
      %p165 = por %p163, %p164
      %p166 = scmp.ne.s32.totalorder %s154, %s155
      %p167 = scmp.eq.s32.totalorder %s33, 17
      %p168 = por %p166, %p167
      %p170 = scmp.ne.s32.totalorder %s155, %s169
      %p171 = scmp.eq.s32.totalorder %s33, 0
      %p172 = por %p170, %p171
      %s174 = sadd.s32 %s173, 1
      %p177 = scmp.eq.s32.totalorder %s27, 17
      %p178 = scmp.ne.s32.totalorder %s173, %s175
      %p179 = scmp.eq.s32.totalorder %s27, 0
      %p180 = por %p178, %p179
      %p181 = scmp.ne.s32.totalorder %s173, %s175
      %p182 = scmp.eq.s32.totalorder %s32, 17
      %p183 = por %p181, %p182
      %p184 = scmp.ne.s32.totalorder %s175, %s176
      %p185 = scmp.eq.s32.totalorder %s32, 0
      %p186 = por %p184, %p185
      %p187 = scmp.ne.s32.totalorder %s175, %s176
      %p188 = scmp.eq.s32.totalorder %s33, 17
      %p189 = por %p187, %p188
      %p191 = scmp.ne.s32.totalorder %s176, %s190
      %p192 = scmp.eq.s32.totalorder %s33, 0
      %p193 = por %p191, %p192
      %s195 = sadd.s32 %s194, 1
      %p198 = scmp.eq.s32.totalorder %s27, 17
      %p199 = scmp.ne.s32.totalorder %s194, %s196
      %p200 = scmp.eq.s32.totalorder %s27, 0
      %p201 = por %p199, %p200
      %p202 = scmp.ne.s32.totalorder %s194, %s196
      %p203 = scmp.eq.s32.totalorder %s32, 17
      %p204 = por %p202, %p203
      %p205 = scmp.ne.s32.totalorder %s196, %s197
      %p206 = scmp.eq.s32.totalorder %s32, 0
      %p207 = por %p205, %p206
      %p208 = scmp.ne.s32.totalorder %s196, %s197
      %p209 = scmp.eq.s32.totalorder %s33, 17
      %p210 = por %p208, %p209
      %p212 = scmp.ne.s32.totalorder %s197, %s211
      %p213 = scmp.eq.s32.totalorder %s33, 0
      %p214 = por %p212, %p213
      %s216 = sadd.s32 %s215, 1
      %p219 = scmp.eq.s32.totalorder %s27, 17
      %p220 = scmp.ne.s32.totalorder %s215, %s217
      %p221 = scmp.eq.s32.totalorder %s27, 0
      %p222 = por %p220, %p221
      %p223 = scmp.ne.s32.totalorder %s215, %s217
      %p224 = scmp.eq.s32.totalorder %s32, 17
      %p225 = por %p223, %p224
      %p226 = scmp.ne.s32.totalorder %s217, %s218
      %p227 = scmp.eq.s32.totalorder %s32, 0
      %p228 = por %p226, %p227
      %p229 = scmp.ne.s32.totalorder %s217, %s218
      %p230 = scmp.eq.s32.totalorder %s33, 17
      %p231 = por %p229, %p230
      %p233 = scmp.ne.s32.totalorder %s218, %s232
      %p234 = scmp.eq.s32.totalorder %s33, 0
      %p235 = por %p233, %p234
      %s237 = sadd.s32 %s236, 1
      %p240 = scmp.eq.s32.totalorder %s27, 17
      %p241 = scmp.ne.s32.totalorder %s236, %s238
      %p242 = scmp.eq.s32.totalorder %s27, 0
      %p243 = por %p241, %p242
      %p244 = scmp.ne.s32.totalorder %s236, %s238
      %p245 = scmp.eq.s32.totalorder %s32, 17
      %p246 = por %p244, %p245
      %p247 = scmp.ne.s32.totalorder %s238, %s239
      %p248 = scmp.eq.s32.totalorder %s32, 0
      %p249 = por %p247, %p248
      %p250 = scmp.ne.s32.totalorder %s238, %s239
      %p251 = scmp.eq.s32.totalorder %s33, 17
      %p252 = por %p250, %p251
      %p254 = scmp.ne.s32.totalorder %s239, %s253
      %p255 = scmp.eq.s32.totalorder %s33, 0
      %p256 = por %p254, %p255
      %s258 = sadd.s32 %s257, 1
      %p261 = scmp.eq.s32.totalorder %s27, 17
      %p262 = scmp.ne.s32.totalorder %s257, %s259
      %p263 = scmp.eq.s32.totalorder %s27, 0
      %p264 = por %p262, %p263
      %p265 = scmp.ne.s32.totalorder %s257, %s259
      %p266 = scmp.eq.s32.totalorder %s32, 17
      %p267 = por %p265, %p266
      %p268 = scmp.ne.s32.totalorder %s259, %s260
      %p269 = scmp.eq.s32.totalorder %s32, 0
      %p270 = por %p268, %p269
      %p271 = scmp.ne.s32.totalorder %s259, %s260
      %p272 = scmp.eq.s32.totalorder %s33, 17
      %p273 = por %p271, %p272
      %p275 = scmp.ne.s32.totalorder %s260, %s274
      %p276 = scmp.eq.s32.totalorder %s33, 0
      %p277 = por %p275, %p276
      %s279 = sadd.s32 %s278, 1
      %p282 = scmp.eq.s32.totalorder %s27, 17
      %p283 = scmp.ne.s32.totalorder %s278, %s280
      %p284 = scmp.eq.s32.totalorder %s27, 0
      %p285 = por %p283, %p284
      %p286 = scmp.ne.s32.totalorder %s278, %s280
      %p287 = scmp.eq.s32.totalorder %s32, 17
      %p288 = por %p286, %p287
      %p289 = scmp.ne.s32.totalorder %s280, %s281
      %p290 = scmp.eq.s32.totalorder %s32, 0
      %p291 = por %p289, %p290
      %p292 = scmp.ne.s32.totalorder %s280, %s281
      %p293 = scmp.eq.s32.totalorder %s33, 17
      %p294 = por %p292, %p293
      %p296 = scmp.ne.s32.totalorder %s281, %s295
      %p297 = scmp.eq.s32.totalorder %s33, 0
      %p298 = por %p296, %p297
      %s300 = sadd.s32 %s299, 1
      %p303 = scmp.eq.s32.totalorder %s27, 17
      %p304 = scmp.ne.s32.totalorder %s299, %s301
      %p305 = scmp.eq.s32.totalorder %s27, 0
      %p306 = por %p304, %p305
      %p307 = scmp.ne.s32.totalorder %s299, %s301
      %p308 = scmp.eq.s32.totalorder %s32, 17
      %p309 = por %p307, %p308
      %p310 = scmp.ne.s32.totalorder %s301, %s302
      %p311 = scmp.eq.s32.totalorder %s32, 0
      %p312 = por %p310, %p311
      %p313 = scmp.ne.s32.totalorder %s301, %s302
      %p314 = scmp.eq.s32.totalorder %s33, 17
      %p315 = por %p313, %p314
      %p317 = scmp.ne.s32.totalorder %s302, %s316
      %p318 = scmp.eq.s32.totalorder %s33, 0
      %p319 = por %p317, %p318
      %s321 = sadd.s32 %s320, 1
      %p324 = scmp.eq.s32.totalorder %s27, 17
      %p325 = scmp.ne.s32.totalorder %s320, %s322
      %p326 = scmp.eq.s32.totalorder %s27, 0
      %p327 = por %p325, %p326
      %p328 = scmp.ne.s32.totalorder %s320, %s322
      %p329 = scmp.eq.s32.totalorder %s32, 17
      %p330 = por %p328, %p329
      %p331 = scmp.ne.s32.totalorder %s322, %s323
      %p332 = scmp.eq.s32.totalorder %s32, 0
      %p333 = por %p331, %p332
      %p334 = scmp.ne.s32.totalorder %s322, %s323
      %p335 = scmp.eq.s32.totalorder %s33, 17
      %p336 = por %p334, %p335
      %p338 = scmp.ne.s32.totalorder %s323, %s337
      %p339 = scmp.eq.s32.totalorder %s33, 0
      %p340 = por %p338, %p339
      %s342 = sadd.s32 %s341, 1
      %p345 = scmp.eq.s32.totalorder %s27, 17
      %p346 = scmp.ne.s32.totalorder %s341, %s343
      %p347 = scmp.eq.s32.totalorder %s27, 0
      %p348 = por %p346, %p347
      %p349 = scmp.ne.s32.totalorder %s341, %s343
      %p350 = scmp.eq.s32.totalorder %s32, 17
      %p351 = por %p349, %p350
      %p352 = scmp.ne.s32.totalorder %s343, %s344
      %p353 = scmp.eq.s32.totalorder %s32, 0
      %p354 = por %p352, %p353
      %p355 = scmp.ne.s32.totalorder %s343, %s344
      %p356 = scmp.eq.s32.totalorder %s33, 17
      %p357 = por %p355, %p356
      %p359 = scmp.ne.s32.totalorder %s344, %s358
      %p360 = scmp.eq.s32.totalorder %s33, 0
      %p361 = por %p359, %p360
      %s363 = sadd.s32 %s362, 1
      %p366 = scmp.eq.s32.totalorder %s27, 17
      %p367 = scmp.ne.s32.totalorder %s362, %s364
      %p368 = scmp.eq.s32.totalorder %s27, 0
      %p369 = por %p367, %p368
      %p370 = scmp.ne.s32.totalorder %s362, %s364
      %p371 = scmp.eq.s32.totalorder %s32, 17
      %p372 = por %p370, %p371
      %p373 = scmp.ne.s32.totalorder %s364, %s365
      %p374 = scmp.eq.s32.totalorder %s32, 0
      %p375 = por %p373, %p374
      %p376 = scmp.ne.s32.totalorder %s364, %s365
      %p377 = scmp.eq.s32.totalorder %s33, 17
      %p378 = por %p376, %p377
      %p380 = scmp.ne.s32.totalorder %s365, %s379
      %p381 = scmp.eq.s32.totalorder %s33, 0
      %p382 = por %p380, %p381
      %s384 = sadd.s32 %s383, 1
      %p387 = scmp.eq.s32.totalorder %s27, 17
      %p388 = scmp.ne.s32.totalorder %s383, %s385
      %p389 = scmp.eq.s32.totalorder %s27, 0
      %p390 = por %p388, %p389
      %p391 = scmp.ne.s32.totalorder %s383, %s385
      %p392 = scmp.eq.s32.totalorder %s32, 17
      %p393 = por %p391, %p392
      %p394 = scmp.ne.s32.totalorder %s385, %s386
      %p395 = scmp.eq.s32.totalorder %s32, 0
      %p396 = por %p394, %p395
      %p397 = scmp.ne.s32.totalorder %s385, %s386
      %p398 = scmp.eq.s32.totalorder %s33, 17
      %p399 = por %p397, %p398
      %p401 = scmp.ne.s32.totalorder %s386, %s400
      %p402 = scmp.eq.s32.totalorder %s33, 0
      %p403 = por %p401, %p402
      %s404 = ssub.s32 %s35, %s42
      %p405 = scmp.eq.s32.totalorder %s404, 0
      %s407 = sadd.s32 %s406, 1
      %s408 = scalar_select %p405, %s406, %s407
      %p411 = pneg %p405
      %p412 = scmp.eq.s32.totalorder %s27, 17
      %p413 = por %p411, %p412
      %p414 = scmp.ne.s32.totalorder %s406, %s409
      %p415 = scmp.eq.s32.totalorder %s27, 0
      %p416 = por %p414, %p415
      %p417 = scmp.ne.s32.totalorder %s406, %s409
      %p418 = scmp.eq.s32.totalorder %s32, 17
      %p419 = por %p417, %p418
      %p420 = scmp.ne.s32.totalorder %s409, %s410
      %p421 = scmp.eq.s32.totalorder %s32, 0
      %p422 = por %p420, %p421
      %p423 = scmp.ne.s32.totalorder %s409, %s410
      %p424 = scmp.eq.s32.totalorder %s33, 17
      %p425 = por %p423, %p424
      %p427 = scmp.ne.s32.totalorder %s410, %s426
      %p428 = scmp.eq.s32.totalorder %s33, 0
      %p429 = por %p427, %p428
      %s430 = ssub.s32 %s35, %s42
      %p431 = scmp.eq.s32.totalorder %s430, 0
      %s433 = sadd.s32 %s432, 1
      %s434 = scalar_select %p431, %s432, %s433
      %p437 = pneg %p431
      %p438 = scmp.eq.s32.totalorder %s27, 17
      %p439 = por %p437, %p438
      %p440 = scmp.ne.s32.totalorder %s432, %s435
      %p441 = scmp.eq.s32.totalorder %s27, 0
      %p442 = por %p440, %p441
      %p443 = scmp.ne.s32.totalorder %s432, %s435
      %p444 = scmp.eq.s32.totalorder %s32, 17
      %p445 = por %p443, %p444
      %p446 = scmp.ne.s32.totalorder %s435, %s436
      %p447 = scmp.eq.s32.totalorder %s32, 0
      %p448 = por %p446, %p447
      %p449 = scmp.ne.s32.totalorder %s435, %s436
      %p450 = scmp.eq.s32.totalorder %s33, 17
      %p451 = por %p449, %p450
      %p453 = scmp.ne.s32.totalorder %s436, %s452
      %p454 = scmp.eq.s32.totalorder %s33, 0
      %p455 = por %p453, %p454
      %s456 = ssub.s32 %s35, %s42
      %p457 = scmp.eq.s32.totalorder %s456, 0
      %s459 = sadd.s32 %s458, 1
      %s460 = scalar_select %p457, %s458, %s459
      %p463 = pneg %p457
      %p464 = scmp.eq.s32.totalorder %s27, 17
      %p465 = por %p463, %p464
      %p466 = scmp.ne.s32.totalorder %s458, %s461
      %p467 = scmp.eq.s32.totalorder %s27, 0
      %p468 = por %p466, %p467
      %p469 = scmp.ne.s32.totalorder %s458, %s461
      %p470 = scmp.eq.s32.totalorder %s32, 17
      %p471 = por %p469, %p470
      %p472 = scmp.ne.s32.totalorder %s461, %s462
      %p473 = scmp.eq.s32.totalorder %s32, 0
      %p474 = por %p472, %p473
      %p475 = scmp.ne.s32.totalorder %s461, %s462
      %p476 = scmp.eq.s32.totalorder %s33, 17
      %p477 = por %p475, %p476
      %p479 = scmp.ne.s32.totalorder %s462, %s478
      %p480 = scmp.eq.s32.totalorder %s33, 0
      %p481 = por %p479, %p480
      %s483 = sadd.s32 %s482, 1
      %p486 = scmp.eq.s32.totalorder %s27, 17
      %p487 = scmp.ne.s32.totalorder %s482, %s484
      %p488 = scmp.eq.s32.totalorder %s27, 0
      %p489 = por %p487, %p488
      %p490 = scmp.ne.s32.totalorder %s482, %s484
      %p491 = scmp.eq.s32.totalorder %s32, 17
      %p492 = por %p490, %p491
      %p493 = scmp.ne.s32.totalorder %s484, %s485
      %p494 = scmp.eq.s32.totalorder %s32, 0
      %p495 = por %p493, %p494
      %p496 = scmp.ne.s32.totalorder %s484, %s485
      %p497 = scmp.eq.s32.totalorder %s33, 17
      %p498 = por %p496, %p497
      %p500 = scmp.ne.s32.totalorder %s485, %s499
      %p501 = scmp.eq.s32.totalorder %s33, 0
      %p502 = por %p500, %p501
      %p503 = scmp.le.s32.totalorder 1, %s27
      %p504 = scmp.lt.s32.totalorder %s27, 19
      %p505 = pnand %p503, %p504
      %p506 = pneg %p505
      // Predicated region
      $region9: #{tpu_custom_call.1} parent=5 // pred_check
        _
      $region10: #{tpu_custom_call.1} parent=5 // pred_check_branch
        %508 = sbr.rel (%p505) target = $region12
      $region11: #{tpu_custom_call.1} parent=5 // pred_region
        %s509 = ssub.s32 %s27, 1
        // Predicated region
        $region13: #{tpu_custom_call.1} parent=11 // pred_check
          %p510 = pneg %p60
        $region14: #{tpu_custom_call.1} parent=11 // pred_check_branch
          %512 = sbr.rel (%p510) target = $region16
        $region15: #{tpu_custom_call.1} parent=11 // pred_region
          _
        $region16: #{tpu_custom_call.1} parent=11 // pred_fallthru
          _
        // Predicated region
        $region17: #{tpu_custom_call.1} parent=11 // pred_check
          %p513 = pneg %p81
        $region18: #{tpu_custom_call.1} parent=11 // pred_check_branch
          %515 = sbr.rel (%p513) target = $region20
        $region19: #{tpu_custom_call.1} parent=11 // pred_region
          _
        $region20: #{tpu_custom_call.1} parent=11 // pred_fallthru
          _
        // Predicated region
        $region21: #{tpu_custom_call.1} parent=11 // pred_check
          %p516 = pneg %p102
        $region22: #{tpu_custom_call.1} parent=11 // pred_check_branch
          %518 = sbr.rel (%p516) target = $region24
        $region23: #{tpu_custom_call.1} parent=11 // pred_region
          _
        $region24: #{tpu_custom_call.1} parent=11 // pred_fallthru
          _
        // Predicated region
        $region25: #{tpu_custom_call.1} parent=11 // pred_check
          %p519 = pneg %p123
        $region26: #{tpu_custom_call.1} parent=11 // pred_check_branch
          %521 = sbr.rel (%p519) target = $region28
        $region27: #{tpu_custom_call.1} parent=11 // pred_region
          _
        $region28: #{tpu_custom_call.1} parent=11 // pred_fallthru
          _
        // Predicated region
        $region29: #{tpu_custom_call.1} parent=11 // pred_check
          %p522 = pneg %p144
        $region30: #{tpu_custom_call.1} parent=11 // pred_check_branch
          %524 = sbr.rel (%p522) target = $region32
        $region31: #{tpu_custom_call.1} parent=11 // pred_region
          _
        $region32: #{tpu_custom_call.1} parent=11 // pred_fallthru
          _
        // Predicated region
        $region33: #{tpu_custom_call.1} parent=11 // pred_check
          %p525 = pneg %p165
        $region34: #{tpu_custom_call.1} parent=11 // pred_check_branch
          %527 = sbr.rel (%p525) target = $region36
        $region35: #{tpu_custom_call.1} parent=11 // pred_region
          _
        $region36: #{tpu_custom_call.1} parent=11 // pred_fallthru
          _
        // Predicated region
        $region37: #{tpu_custom_call.1} parent=11 // pred_check
          %p528 = pneg %p186
        $region38: #{tpu_custom_call.1} parent=11 // pred_check_branch
          %530 = sbr.rel (%p528) target = $region40
        $region39: #{tpu_custom_call.1} parent=11 // pred_region
          _
        $region40: #{tpu_custom_call.1} parent=11 // pred_fallthru
          _
        // Predicated region
        $region41: #{tpu_custom_call.1} parent=11 // pred_check
          %p531 = pneg %p207
        $region42: #{tpu_custom_call.1} parent=11 // pred_check_branch
          %533 = sbr.rel (%p531) target = $region44
        $region43: #{tpu_custom_call.1} parent=11 // pred_region
          _
        $region44: #{tpu_custom_call.1} parent=11 // pred_fallthru
          _
        // Predicated region
        $region45: #{tpu_custom_call.1} parent=11 // pred_check
          %p534 = pneg %p228
        $region46: #{tpu_custom_call.1} parent=11 // pred_check_branch
          %536 = sbr.rel (%p534) target = $region48
        $region47: #{tpu_custom_call.1} parent=11 // pred_region
          _
        $region48: #{tpu_custom_call.1} parent=11 // pred_fallthru
          _
        // Predicated region
        $region49: #{tpu_custom_call.1} parent=11 // pred_check
          %p537 = pneg %p249
        $region50: #{tpu_custom_call.1} parent=11 // pred_check_branch
          %539 = sbr.rel (%p537) target = $region52
        $region51: #{tpu_custom_call.1} parent=11 // pred_region
          _
        $region52: #{tpu_custom_call.1} parent=11 // pred_fallthru
          _
        // Predicated region
        $region53: #{tpu_custom_call.1} parent=11 // pred_check
          %p540 = pneg %p270
        $region54: #{tpu_custom_call.1} parent=11 // pred_check_branch
          %542 = sbr.rel (%p540) target = $region56
        $region55: #{tpu_custom_call.1} parent=11 // pred_region
          _
        $region56: #{tpu_custom_call.1} parent=11 // pred_fallthru
          _
        // Predicated region
        $region57: #{tpu_custom_call.1} parent=11 // pred_check
          %p543 = pneg %p291
        $region58: #{tpu_custom_call.1} parent=11 // pred_check_branch
          %545 = sbr.rel (%p543) target = $region60
        $region59: #{tpu_custom_call.1} parent=11 // pred_region
          _
        $region60: #{tpu_custom_call.1} parent=11 // pred_fallthru
          _
        // Predicated region
        $region61: #{tpu_custom_call.1} parent=11 // pred_check
          %p546 = pneg %p312
        $region62: #{tpu_custom_call.1} parent=11 // pred_check_branch
          %548 = sbr.rel (%p546) target = $region64
        $region63: #{tpu_custom_call.1} parent=11 // pred_region
          _
        $region64: #{tpu_custom_call.1} parent=11 // pred_fallthru
          _
        // Predicated region
        $region65: #{tpu_custom_call.1} parent=11 // pred_check
          %p549 = pneg %p333
        $region66: #{tpu_custom_call.1} parent=11 // pred_check_branch
          %551 = sbr.rel (%p549) target = $region68
        $region67: #{tpu_custom_call.1} parent=11 // pred_region
          _
        $region68: #{tpu_custom_call.1} parent=11 // pred_fallthru
          _
        // Predicated region
        $region69: #{tpu_custom_call.1} parent=11 // pred_check
          %p552 = pneg %p354
        $region70: #{tpu_custom_call.1} parent=11 // pred_check_branch
          %554 = sbr.rel (%p552) target = $region72
        $region71: #{tpu_custom_call.1} parent=11 // pred_region
          _
        $region72: #{tpu_custom_call.1} parent=11 // pred_fallthru
          _
        // Predicated region
        $region73: #{tpu_custom_call.1} parent=11 // pred_check
          %p555 = pneg %p375
        $region74: #{tpu_custom_call.1} parent=11 // pred_check_branch
          %557 = sbr.rel (%p555) target = $region76
        $region75: #{tpu_custom_call.1} parent=11 // pred_region
          _
        $region76: #{tpu_custom_call.1} parent=11 // pred_fallthru
          _
        // Predicated region
        $region77: #{tpu_custom_call.1} parent=11 // pred_check
          %p558 = pneg %p396
        $region78: #{tpu_custom_call.1} parent=11 // pred_check_branch
          %560 = sbr.rel (%p558) target = $region80
        $region79: #{tpu_custom_call.1} parent=11 // pred_region
          _
        $region80: #{tpu_custom_call.1} parent=11 // pred_fallthru
          _
      $region12: #{tpu_custom_call.1} parent=5 // pred_fallthru
        _
      %p561 = scmp.lt.s32.totalorder %s27, 18
      // Predicated region
      $region81: #{tpu_custom_call.1} parent=5 // pred_check
        %p562 = pneg %p561
      $region82: #{tpu_custom_call.1} parent=5 // pred_check_branch
        %564 = sbr.rel (%p562) target = $region84
      $region83: #{tpu_custom_call.1} parent=5 // pred_region
        // Predicated region
        $region85: #{tpu_custom_call.1} parent=83 // pred_check
          %p565 = pneg %p416
        $region86: #{tpu_custom_call.1} parent=83 // pred_check_branch
          %567 = sbr.rel (%p565) target = $region88
        $region87: #{tpu_custom_call.1} parent=83 // pred_region
          %s568 = smul.u32 2, %s35
          %p569 = scmp.lt.s32.totalorder %s568, 5
          %s570 = scalar_select %p569, %s568, 5
          %s571 = smul.addr %s570, 8
          %s572 = scalar_lea.vmem %s17, %s571
          %s573 = smul.u32 2, %s35
        $region88: #{tpu_custom_call.1} parent=83 // pred_fallthru
          _
        // Predicated region
        $region89: #{tpu_custom_call.1} parent=83 // pred_check
          %p574 = pneg %p442
        $region90: #{tpu_custom_call.1} parent=83 // pred_check_branch
          %576 = sbr.rel (%p574) target = $region92
        $region91: #{tpu_custom_call.1} parent=83 // pred_region
          %s577 = smul.u32 2, %s35
          %p578 = scmp.lt.s32.totalorder %s577, 5
          %s579 = scalar_select %p578, %s577, 5
          %s580 = smul.addr %s579, 8
          %s581 = scalar_lea.vmem %s18, %s580
          %s582 = smul.u32 2, %s35
        $region92: #{tpu_custom_call.1} parent=83 // pred_fallthru
          _
        // Predicated region
        $region93: #{tpu_custom_call.1} parent=83 // pred_check
          %p583 = pneg %p468
        $region94: #{tpu_custom_call.1} parent=83 // pred_check_branch
          %585 = sbr.rel (%p583) target = $region96
        $region95: #{tpu_custom_call.1} parent=83 // pred_region
          %s586 = smul.u32 2, %s35
          %p587 = scmp.lt.s32.totalorder %s586, 5
          %s588 = scalar_select %p587, %s586, 5
          %s589 = smul.addr %s588, 4
          %s590 = scalar_lea.vmem %s19, %s589
          %s591 = smul.u32 2, %s35
        $region96: #{tpu_custom_call.1} parent=83 // pred_fallthru
          _
      $region84: #{tpu_custom_call.1} parent=5 // pred_fallthru
        _
      %p592 = scmp.le.s32.totalorder 1, %s27
      %p593 = scmp.lt.s32.totalorder %s27, 19
      %p594 = pnand %p592, %p593
      %p595 = pneg %p594
      // Predicated region
      $region97: #{tpu_custom_call.1} parent=5 // pred_check
        _
      $region98: #{tpu_custom_call.1} parent=5 // pred_check_branch
        %597 = sbr.rel (%p594) target = $region100
      $region99: #{tpu_custom_call.1} parent=5 // pred_region
        %s598 = ssub.s32 %s27, 1
        %p599 = pneg %p60
        %p600 = pneg %p57
        %p601 = pneg %p81
        %p602 = pneg %p78
        %p603 = pneg %p102
        %p604 = pneg %p99
        %p605 = pneg %p123
        %p606 = pneg %p120
        %p607 = pneg %p144
        %p608 = pneg %p141
        %p609 = pneg %p165
        %p610 = pneg %p162
        %p611 = pneg %p186
        %p612 = pneg %p183
        %p613 = pneg %p207
        %p614 = pneg %p204
        %p615 = pneg %p228
        %p616 = pneg %p225
        %p617 = pneg %p249
        %p618 = pneg %p246
        %p619 = pneg %p270
        %p620 = pneg %p267
        %p621 = pneg %p291
        %p622 = pneg %p288
        %p623 = pneg %p312
        %p624 = pneg %p309
        %p625 = pneg %p333
        %p626 = pneg %p330
        %p627 = pneg %p354
        %p628 = pneg %p351
        %p629 = pneg %p375
        %p630 = pneg %p372
        %p631 = pneg %p396
        %p632 = pneg %p393
        %s633 = smul.u32 2, %s37
        %p634 = scmp.lt.s32.totalorder %s633, 5
        %s635 = scalar_select %p634, %s633, 5
        %s636 = smul.addr %s635, 8
        %s637 = scalar_lea.vmem %s17, %s636
        %p638 = pneg %p422
        %p639 = pneg %p419
        %s640 = smul.u32 2, %s37
        %p641 = scmp.lt.s32.totalorder %s640, 5
        %s642 = scalar_select %p641, %s640, 5
        %s643 = smul.addr %s642, 8
        %s644 = scalar_lea.vmem %s18, %s643
        %p645 = pneg %p448
        %p646 = pneg %p445
        %s647 = smul.u32 2, %s37
        %p648 = scmp.lt.s32.totalorder %s647, 5
        %s649 = scalar_select %p648, %s647, 5
        %s650 = smul.addr %s649, 4
        %s651 = scalar_lea.vmem %s19, %s650
        %p652 = pneg %p474
        %p653 = pneg %p471
        %p654 = pneg %p495
        %p655 = pneg %p492
        %s656 = smul.u32 2, %s37
        %p657 = scmp.lt.s32.totalorder %s656, 5
        %s658 = scalar_select %p657, %s656, 5
        %s659 = smul.addr %s658, 8
        %s660 = scalar_lea.vmem %s17, %s659
        %s661 = smul.u32 2, %s37
        %s662 = smul.u32 2, %s37
        %p663 = scmp.lt.s32.totalorder %s662, 5
        %s664 = scalar_select %p663, %s662, 5
        %s665 = smul.addr %s664, 8
        %s666 = scalar_lea.vmem %s18, %s665
        %s667 = smul.u32 2, %s37
        %s668 = smul.u32 2, %s37
        %p669 = scmp.lt.s32.totalorder %s668, 5
        %s670 = scalar_select %p669, %s668, 5
        %s671 = smul.addr %s670, 4
        %s672 = scalar_lea.vmem %s19, %s671
        %s673 = smul.u32 2, %s37
        %p675 = scmp.eq.s32.totalorder %s36, 0
        %p676 = scmp.eq.s32.totalorder %s37, 0
        %p677 = pnand %p675, %p676
        %p678 = pneg %p677
        // Predicated region
        $region101: #{tpu_custom_call.1} parent=99 // pred_check
          _
        $region102: #{tpu_custom_call.1} parent=99 // pred_check_branch
          %680 = sbr.rel (%p677) target = $region104
        $region103: #{tpu_custom_call.1} parent=99 // pred_region
          %v681 = vld [vmem:[%s0] sm:$0xf]
          %v682 = vld [vmem:[%s0 + $0x4] sm:$0xf]
          %v683 = vld [vmem:[%s2] sm:$0xf]
          %v684 = vld [vmem:[%s2 + $0x4] sm:$0xf]
          %v685 = vld [vmem:[%s3] sm:$0x1]
          %v687 = vperm.slane %v685, 0
          %v691 = vunpack.c.l.b16 %v681
          %v692 = vunpack.c.l.b16 %v682
          %v693 = vpack.c.b16 %v692, %v691
          %v696 = vunpack.c.l.b16 %v683
          %v697 = vunpack.c.l.b16 %v684
          %v698 = vpack.c.b16 %v697, %v696
          %vm700 = vcmask 130048
          %v702 = vsel %vm700, %v693, 0
          %704 = vmatpush.bf16.msra.mxu0 0
          %705 = vmatpush.bf16.msra.mxu0 0
          %706 = vmatpush.bf16.msra.mxu0 0
          %707 = vmatpush.bf16.msra.mxu0 0
          %708 = vmatpush.bf16.msra.mxu0 0
          %709 = vmatpush.bf16.msra.mxu0 0
          %710 = vmatpush.bf16.msra.mxu0 0
          %711 = vmatpush.bf16.msra.mxu0 %v698
          %712 = vmatmul.bf16.gmra.mxu0 %v702
          %v713 = vpop.f32.mrf.mxu0
          %v714 = vadd.f32 %v687, %v713
          %v715 = vpop.f32.mrf.mxu0
          %v716 = vadd.f32 %v687, %v715
          %717 = vdwg.mxu0
          %v718 = vmax.f32 %v714, 0.0
          %v719 = vmax.f32 %v716, 0.0
          %vm720 = vcmask 261120
          %721 = vst.msk [vmem:[#allocation2] sm:$0xff] %vm720, %v718
          %722 = vst.msk [vmem:[#allocation2 + $0x8] sm:$0xff] %vm720, %v719
        $region104: #{tpu_custom_call.1} parent=99 // pred_fallthru
          _
        // Predicated region
        $region105: #{tpu_custom_call.1} parent=99 // pred_check
          %p723 = pneg %p676
        $region106: #{tpu_custom_call.1} parent=99 // pred_check_branch
          %725 = sbr.rel (%p723) target = $region108
        $region107: #{tpu_custom_call.1} parent=99 // pred_region
          %vm726 = vcmask 261120
          %727 = vst.msk [vmem:[#allocation3] sm:$0xff] %vm726, 0.0
          %728 = vst.msk [vmem:[#allocation3 + $0x8] sm:$0xff] %vm726, 0.0
        $region108: #{tpu_custom_call.1} parent=99 // pred_fallthru
          _
        %v729 = vld [vmem:[#allocation2] sm:$0xff]
        %v730 = vld [vmem:[#allocation2 + $0x8] sm:$0xff]
        %v731 = vpack.c.bf16 %v730, %v729
        %v732 = vlaneseq
        %v733 = vand.u32 %v732, 127
        %v734 = vld [vmem:[%s660] sm:$0xff]
        %v735 = vld [vmem:[%s660 + $0x8] sm:$0xff]
        %736 = vset.pattern.permute.xlu0 0
        %737 = vperm.xlu0 %736, %v734
        %v738 = vpop.permute.xlu0 %737
        %739 = vset.pattern.permute.xlu0 0
        %740 = vperm.xlu0 %739, %v735
        %v741 = vpop.permute.xlu0 %740
        %vm742 = vcmp.eq.s32.totalorder %v733, %v738
        %vm743 = vcmp.eq.s32.totalorder %v733, %v741
        %v744 = vsel %vm742, 1.0, 0.0
        %v745 = vsel %vm743, 1.0, 0.0
        %v746 = vpack.c.bf16 %v745, %v744
        %v747 = vld [vmem:[%s666] sm:$0xff]
        %v748 = vld [vmem:[%s666 + $0x8] sm:$0xff]
        %749 = vset.pattern.permute.xlu0 0
        %750 = vperm.xlu0 %749, %v747
        %v751 = vpop.permute.xlu0 %750
        %752 = vset.pattern.permute.xlu0 0
        %753 = vperm.xlu0 %752, %v748
        %v754 = vpop.permute.xlu0 %753
        %vm755 = vcmp.eq.s32.totalorder %v733, %v751
        %vm756 = vcmp.eq.s32.totalorder %v733, %v754
        %v757 = vsel %vm755, 1.0, 0.0
        %v758 = vsel %vm756, 1.0, 0.0
        %v759 = vpack.c.bf16 %v758, %v757
        %v760 = vld [vmem:[%s672] sm:$0xf]
        %v761 = vld [vmem:[%s672 + $0x4] sm:$0xf]
        %v762 = vld [vmem:[%s4] sm:$0xf]
        %v763 = vld [vmem:[%s5] sm:$0x1]
        %v765 = vperm.slane %v763, 0
        %v769 = vunpack.c.l.b16 %v760
        %v770 = vunpack.c.l.b16 %v761
        %v771 = vpack.c.b16 %v770, %v769
        %vm772 = vcmask 64512
        %v774 = vsel %vm772, %v771, 0
        %vm776 = vcmask 1043456
        %v778 = vsel %vm776, %v762, 0
        %780 = vmatpush.bf16.msra.mxu0 0
        %781 = vmatpush.bf16.msra.mxu0 0
        %782 = vmatpush.bf16.msra.mxu0 0
        %783 = vmatpush.bf16.msra.mxu0 0
        %784 = vmatpush.bf16.msra.mxu0 0
        %785 = vmatpush.bf16.msra.mxu0 0
        %786 = vmatpush.bf16.msra.mxu0 0
        %787 = vmatpush.bf16.msra.mxu0 %v778
        %788 = vmatmul.bf16.gmra.mxu0 %v774
        %v789 = vpop.f32.mrf.mxu0
        %v790 = vadd.f32 %v765, %v789
        %v791 = vpop.f32.mrf.mxu0
        %v792 = vadd.f32 %v765, %v791
        %793 = vdwg.mxu0
        %v794 = vmax.f32 %v790, 0.0
        %v795 = vmax.f32 %v792, 0.0
        %v796 = vpack.c.bf16 %v795, %v794
        %v797 = vld [vmem:[%s6] sm:$0xff]
        %v798 = vld [vmem:[%s6 + $0x8] sm:$0xff]
        %v799 = vld [vmem:[%s6 + $0x10] sm:$0xff]
        %v800 = vld [vmem:[%s6 + $0x18] sm:$0xff]
        %v801 = vld [vmem:[%s6 + $0x20] sm:$0xff]
        %v802 = vld [vmem:[%s6 + $0x28] sm:$0xff]
        %v803 = vld [vmem:[%s6 + $0x30] sm:$0xff]
        %v804 = vld [vmem:[%s6 + $0x38] sm:$0xff]
        %v805 = vld [vmem:[%s6 + $0x40] sm:$0xff]
        %v806 = vld [vmem:[%s6 + $0x48] sm:$0xff]
        %v807 = vld [vmem:[%s6 + $0x50] sm:$0xff]
        %v808 = vld [vmem:[%s6 + $0x58] sm:$0xff]
        %v809 = vld [vmem:[%s6 + $0x60] sm:$0xff]
        %v810 = vld [vmem:[%s6 + $0x68] sm:$0xff]
        %v811 = vld [vmem:[%s6 + $0x70] sm:$0xff]
        %v812 = vld [vmem:[%s6 + $0x78] sm:$0xff]
        %v813 = vld [vmem:[%s7] sm:$0xff]
        %v815 = vperm.slane %v813, 0
        %v816 = vperm.slane %v813, 1
        %v817 = vperm.slane %v813, 2
        %v818 = vperm.slane %v813, 3
        %v819 = vperm.slane %v813, 4
        %v820 = vperm.slane %v813, 5
        %v821 = vperm.slane %v813, 6
        %v822 = vperm.slane %v813, 7
        %v847 = vunpack.c.l.b16 %v797
        %v848 = vunpack.c.h.b16 %v797
        %v849 = vunpack.c.l.b16 %v798
        %v850 = vunpack.c.h.b16 %v798
        %v851 = vunpack.c.l.b16 %v799
        %v852 = vunpack.c.h.b16 %v799
        %v853 = vunpack.c.l.b16 %v800
        %v854 = vunpack.c.h.b16 %v800
        %v855 = vunpack.c.l.b16 %v801
        %v856 = vunpack.c.h.b16 %v801
        %v857 = vunpack.c.l.b16 %v802
        %v858 = vunpack.c.h.b16 %v802
        %v859 = vunpack.c.l.b16 %v803
        %v860 = vunpack.c.h.b16 %v803
        %v861 = vunpack.c.l.b16 %v804
        %v862 = vunpack.c.h.b16 %v804
        %v863 = vunpack.c.l.b16 %v805
        %v864 = vunpack.c.h.b16 %v805
        %v865 = vunpack.c.l.b16 %v806
        %v866 = vunpack.c.h.b16 %v806
        %v867 = vunpack.c.l.b16 %v807
        %v868 = vunpack.c.h.b16 %v807
        %v869 = vunpack.c.l.b16 %v808
        %v870 = vunpack.c.h.b16 %v808
        %v871 = vunpack.c.l.b16 %v809
        %v872 = vunpack.c.h.b16 %v809
        %v873 = vunpack.c.l.b16 %v810
        %v874 = vunpack.c.h.b16 %v810
        %v875 = vunpack.c.l.b16 %v811
        %v876 = vunpack.c.h.b16 %v811
        %v877 = vunpack.c.l.b16 %v812
        %v878 = vunpack.c.h.b16 %v812
        %v879 = vpack.c.b16 %v855, %v847
        %v880 = vpack.c.b16 %v856, %v848
        %v881 = vpack.c.b16 %v857, %v849
        %v882 = vpack.c.b16 %v858, %v850
        %v883 = vpack.c.b16 %v859, %v851
        %v884 = vpack.c.b16 %v860, %v852
        %v885 = vpack.c.b16 %v861, %v853
        %v886 = vpack.c.b16 %v862, %v854
        %v887 = vpack.c.b16 %v871, %v863
        %v888 = vpack.c.b16 %v872, %v864
        %v889 = vpack.c.b16 %v873, %v865
        %v890 = vpack.c.b16 %v874, %v866
        %v891 = vpack.c.b16 %v875, %v867
        %v892 = vpack.c.b16 %v876, %v868
        %v893 = vpack.c.b16 %v877, %v869
        %v894 = vpack.c.b16 %v878, %v870
        %vm911 = vcmask 261120
        %v913 = vsel %vm911, %v796, 0
        %915 = vmatpush.bf16.msra.mxu0 0
        %916 = vmatpush.bf16.msra.mxu0 0
        %917 = vmatpush.bf16.msra.mxu0 0
        %918 = vmatpush.bf16.msra.mxu0 0
        %919 = vmatpush.bf16.msra.mxu0 0
        %920 = vmatpush.bf16.msra.mxu0 0
        %921 = vmatpush.bf16.msra.mxu0 %v887
        %922 = vmatpush.bf16.msra.mxu0 %v879
        %923 = vmatmul.bf16.gmra.mxu0 %v913
        %v924 = vpop.f32.mrf.mxu0
        %v925 = vadd.f32 %v815, %v924
        %v926 = vpop.f32.mrf.mxu0
        %v927 = vadd.f32 %v815, %v926
        %928 = vdwg.mxu0
        %929 = vmatpush.bf16.msra.mxu0 0
        %930 = vmatpush.bf16.msra.mxu0 0
        %931 = vmatpush.bf16.msra.mxu0 0
        %932 = vmatpush.bf16.msra.mxu0 0
        %933 = vmatpush.bf16.msra.mxu0 0
        %934 = vmatpush.bf16.msra.mxu0 0
        %935 = vmatpush.bf16.msra.mxu0 %v888
        %936 = vmatpush.bf16.msra.mxu0 %v880
        %937 = vmatmul.bf16.gmra.mxu0 %v913
        %v938 = vpop.f32.mrf.mxu0
        %v939 = vadd.f32 %v816, %v938
        %v940 = vpop.f32.mrf.mxu0
        %v941 = vadd.f32 %v816, %v940
        %942 = vdwg.mxu0
        %943 = vmatpush.bf16.msra.mxu0 0
        %944 = vmatpush.bf16.msra.mxu0 0
        %945 = vmatpush.bf16.msra.mxu0 0
        %946 = vmatpush.bf16.msra.mxu0 0
        %947 = vmatpush.bf16.msra.mxu0 0
        %948 = vmatpush.bf16.msra.mxu0 0
        %949 = vmatpush.bf16.msra.mxu0 %v889
        %950 = vmatpush.bf16.msra.mxu0 %v881
        %951 = vmatmul.bf16.gmra.mxu0 %v913
        %v952 = vpop.f32.mrf.mxu0
        %v953 = vadd.f32 %v817, %v952
        %v954 = vpop.f32.mrf.mxu0
        %v955 = vadd.f32 %v817, %v954
        %956 = vdwg.mxu0
        %957 = vmatpush.bf16.msra.mxu0 0
        %958 = vmatpush.bf16.msra.mxu0 0
        %959 = vmatpush.bf16.msra.mxu0 0
        %960 = vmatpush.bf16.msra.mxu0 0
        %961 = vmatpush.bf16.msra.mxu0 0
        %962 = vmatpush.bf16.msra.mxu0 0
        %963 = vmatpush.bf16.msra.mxu0 %v890
        %964 = vmatpush.bf16.msra.mxu0 %v882
        %965 = vmatmul.bf16.gmra.mxu0 %v913
        %v966 = vpop.f32.mrf.mxu0
        %v967 = vadd.f32 %v818, %v966
        %v968 = vpop.f32.mrf.mxu0
        %v969 = vadd.f32 %v818, %v968
        %970 = vdwg.mxu0
        %971 = vmatpush.bf16.msra.mxu0 0
        %972 = vmatpush.bf16.msra.mxu0 0
        %973 = vmatpush.bf16.msra.mxu0 0
        %974 = vmatpush.bf16.msra.mxu0 0
        %975 = vmatpush.bf16.msra.mxu0 0
        %976 = vmatpush.bf16.msra.mxu0 0
        %977 = vmatpush.bf16.msra.mxu0 %v891
        %978 = vmatpush.bf16.msra.mxu0 %v883
        %979 = vmatmul.bf16.gmra.mxu0 %v913
        %v980 = vpop.f32.mrf.mxu0
        %v981 = vadd.f32 %v819, %v980
        %v982 = vpop.f32.mrf.mxu0
        %v983 = vadd.f32 %v819, %v982
        %984 = vdwg.mxu0
        %985 = vmatpush.bf16.msra.mxu0 0
        %986 = vmatpush.bf16.msra.mxu0 0
        %987 = vmatpush.bf16.msra.mxu0 0
        %988 = vmatpush.bf16.msra.mxu0 0
        %989 = vmatpush.bf16.msra.mxu0 0
        %990 = vmatpush.bf16.msra.mxu0 0
        %991 = vmatpush.bf16.msra.mxu0 %v892
        %992 = vmatpush.bf16.msra.mxu0 %v884
        %993 = vmatmul.bf16.gmra.mxu0 %v913
        %v994 = vpop.f32.mrf.mxu0
        %v995 = vadd.f32 %v820, %v994
        %v996 = vpop.f32.mrf.mxu0
        %v997 = vadd.f32 %v820, %v996
        %998 = vdwg.mxu0
        %999 = vmatpush.bf16.msra.mxu0 0
        %1000 = vmatpush.bf16.msra.mxu0 0
        %1001 = vmatpush.bf16.msra.mxu0 0
        %1002 = vmatpush.bf16.msra.mxu0 0
        %1003 = vmatpush.bf16.msra.mxu0 0
        %1004 = vmatpush.bf16.msra.mxu0 0
        %1005 = vmatpush.bf16.msra.mxu0 %v893
        %1006 = vmatpush.bf16.msra.mxu0 %v885
        %1007 = vmatmul.bf16.gmra.mxu0 %v913
        %v1008 = vpop.f32.mrf.mxu0
        %v1009 = vadd.f32 %v821, %v1008
        %v1010 = vpop.f32.mrf.mxu0
        %v1011 = vadd.f32 %v821, %v1010
        %1012 = vdwg.mxu0
        %1013 = vmatpush.bf16.msra.mxu0 0
        %1014 = vmatpush.bf16.msra.mxu0 0
        %1015 = vmatpush.bf16.msra.mxu0 0
        %1016 = vmatpush.bf16.msra.mxu0 0
        %1017 = vmatpush.bf16.msra.mxu0 0
        %1018 = vmatpush.bf16.msra.mxu0 0
        %1019 = vmatpush.bf16.msra.mxu0 %v894
        %1020 = vmatpush.bf16.msra.mxu0 %v886
        %1021 = vmatmul.bf16.gmra.mxu0 %v913
        %v1022 = vpop.f32.mrf.mxu0
        %v1023 = vadd.f32 %v822, %v1022
        %v1024 = vpop.f32.mrf.mxu0
        %v1025 = vadd.f32 %v822, %v1024
        %1026 = vdwg.mxu0
        %vm1027 = vcmask 130048
        %v1029 = vsel %vm1027, %v746, 0
        %1031 = vmatpush.bf16.msra.mxu0 0
        %1032 = vmatpush.bf16.msra.mxu0 0
        %1033 = vmatpush.bf16.msra.mxu0 0
        %1034 = vmatpush.bf16.msra.mxu0 0
        %1035 = vmatpush.bf16.msra.mxu0 0
        %1036 = vmatpush.bf16.msra.mxu0 0
        %1037 = vmatpush.bf16.msra.mxu0 0
        %1038 = vmatpush.bf16.msra.mxu0 %v731
        %1039 = vmatmul.bf16.gmra.mxu0 %v1029
        %v1040 = vpop.f32.mrf.mxu0
        %v1041 = vadd.f32 0.0, %v1040
        %v1042 = vpop.f32.mrf.mxu0
        %v1043 = vadd.f32 0.0, %v1042
        %1044 = vdwg.mxu0
        %v1045 = vpack.c.bf16 %v1043, %v1041
        %v1046 = vld [vmem:[%s8] sm:$0xff]
        %v1047 = vld [vmem:[%s8 + $0x8] sm:$0xff]
        %v1048 = vld [vmem:[%s8 + $0x10] sm:$0xff]
        %v1049 = vld [vmem:[%s8 + $0x18] sm:$0xff]
        %v1050 = vld [vmem:[%s8 + $0x20] sm:$0xff]
        %v1051 = vld [vmem:[%s8 + $0x28] sm:$0xff]
        %v1052 = vld [vmem:[%s8 + $0x30] sm:$0xff]
        %v1053 = vld [vmem:[%s8 + $0x38] sm:$0xff]
        %v1054 = vld [vmem:[%s8 + $0x40] sm:$0xff]
        %v1055 = vld [vmem:[%s8 + $0x48] sm:$0xff]
        %v1056 = vld [vmem:[%s8 + $0x50] sm:$0xff]
        %v1057 = vld [vmem:[%s8 + $0x58] sm:$0xff]
        %v1058 = vld [vmem:[%s8 + $0x60] sm:$0xff]
        %v1059 = vld [vmem:[%s8 + $0x68] sm:$0xff]
        %v1060 = vld [vmem:[%s8 + $0x70] sm:$0xff]
        %v1061 = vld [vmem:[%s8 + $0x78] sm:$0xff]
        %v1078 = vunpack.c.l.b16 %v1046
        %v1079 = vunpack.c.h.b16 %v1046
        %v1080 = vunpack.c.l.b16 %v1047
        %v1081 = vunpack.c.h.b16 %v1047
        %v1082 = vunpack.c.l.b16 %v1048
        %v1083 = vunpack.c.h.b16 %v1048
        %v1084 = vunpack.c.l.b16 %v1049
        %v1085 = vunpack.c.h.b16 %v1049
        %v1086 = vunpack.c.l.b16 %v1050
        %v1087 = vunpack.c.h.b16 %v1050
        %v1088 = vunpack.c.l.b16 %v1051
        %v1089 = vunpack.c.h.b16 %v1051
        %v1090 = vunpack.c.l.b16 %v1052
        %v1091 = vunpack.c.h.b16 %v1052
        %v1092 = vunpack.c.l.b16 %v1053
        %v1093 = vunpack.c.h.b16 %v1053
        %v1094 = vunpack.c.l.b16 %v1054
        %v1095 = vunpack.c.h.b16 %v1054
        %v1096 = vunpack.c.l.b16 %v1055
        %v1097 = vunpack.c.h.b16 %v1055
        %v1098 = vunpack.c.l.b16 %v1056
        %v1099 = vunpack.c.h.b16 %v1056
        %v1100 = vunpack.c.l.b16 %v1057
        %v1101 = vunpack.c.h.b16 %v1057
        %v1102 = vunpack.c.l.b16 %v1058
        %v1103 = vunpack.c.h.b16 %v1058
        %v1104 = vunpack.c.l.b16 %v1059
        %v1105 = vunpack.c.h.b16 %v1059
        %v1106 = vunpack.c.l.b16 %v1060
        %v1107 = vunpack.c.h.b16 %v1060
        %v1108 = vunpack.c.l.b16 %v1061
        %v1109 = vunpack.c.h.b16 %v1061
        %v1110 = vpack.c.b16 %v1086, %v1078
        %v1111 = vpack.c.b16 %v1087, %v1079
        %v1112 = vpack.c.b16 %v1088, %v1080
        %v1113 = vpack.c.b16 %v1089, %v1081
        %v1114 = vpack.c.b16 %v1090, %v1082
        %v1115 = vpack.c.b16 %v1091, %v1083
        %v1116 = vpack.c.b16 %v1092, %v1084
        %v1117 = vpack.c.b16 %v1093, %v1085
        %v1118 = vpack.c.b16 %v1102, %v1094
        %v1119 = vpack.c.b16 %v1103, %v1095
        %v1120 = vpack.c.b16 %v1104, %v1096
        %v1121 = vpack.c.b16 %v1105, %v1097
        %v1122 = vpack.c.b16 %v1106, %v1098
        %v1123 = vpack.c.b16 %v1107, %v1099
        %v1124 = vpack.c.b16 %v1108, %v1100
        %v1125 = vpack.c.b16 %v1109, %v1101
        %v1143 = vsel %vm911, %v1045, 0
        %1145 = vmatpush.bf16.msra.mxu0 0
        %1146 = vmatpush.bf16.msra.mxu0 0
        %1147 = vmatpush.bf16.msra.mxu0 0
        %1148 = vmatpush.bf16.msra.mxu0 0
        %1149 = vmatpush.bf16.msra.mxu0 0
        %1150 = vmatpush.bf16.msra.mxu0 0
        %1151 = vmatpush.bf16.msra.mxu0 %v1118
        %1152 = vmatpush.bf16.msra.mxu0 %v1110
        %1153 = vmatmul.bf16.gmra.mxu0 %v1143
        %v1154 = vpop.f32.mrf.mxu0
        %v1155 = vadd.f32 0.0, %v1154
        %v1156 = vpop.f32.mrf.mxu0
        %v1157 = vadd.f32 0.0, %v1156
        %1158 = vdwg.mxu0
        %1159 = vmatpush.bf16.msra.mxu0 0
        %1160 = vmatpush.bf16.msra.mxu0 0
        %1161 = vmatpush.bf16.msra.mxu0 0
        %1162 = vmatpush.bf16.msra.mxu0 0
        %1163 = vmatpush.bf16.msra.mxu0 0
        %1164 = vmatpush.bf16.msra.mxu0 0
        %1165 = vmatpush.bf16.msra.mxu0 %v1119
        %1166 = vmatpush.bf16.msra.mxu0 %v1111
        %1167 = vmatmul.bf16.gmra.mxu0 %v1143
        %v1168 = vpop.f32.mrf.mxu0
        %v1169 = vadd.f32 0.0, %v1168
        %v1170 = vpop.f32.mrf.mxu0
        %v1171 = vadd.f32 0.0, %v1170
        %1172 = vdwg.mxu0
        %1173 = vmatpush.bf16.msra.mxu0 0
        %1174 = vmatpush.bf16.msra.mxu0 0
        %1175 = vmatpush.bf16.msra.mxu0 0
        %1176 = vmatpush.bf16.msra.mxu0 0
        %1177 = vmatpush.bf16.msra.mxu0 0
        %1178 = vmatpush.bf16.msra.mxu0 0
        %1179 = vmatpush.bf16.msra.mxu0 %v1120
        %1180 = vmatpush.bf16.msra.mxu0 %v1112
        %1181 = vmatmul.bf16.gmra.mxu0 %v1143
        %v1182 = vpop.f32.mrf.mxu0
        %v1183 = vadd.f32 0.0, %v1182
        %v1184 = vpop.f32.mrf.mxu0
        %v1185 = vadd.f32 0.0, %v1184
        %1186 = vdwg.mxu0
        %1187 = vmatpush.bf16.msra.mxu0 0
        %1188 = vmatpush.bf16.msra.mxu0 0
        %1189 = vmatpush.bf16.msra.mxu0 0
        %1190 = vmatpush.bf16.msra.mxu0 0
        %1191 = vmatpush.bf16.msra.mxu0 0
        %1192 = vmatpush.bf16.msra.mxu0 0
        %1193 = vmatpush.bf16.msra.mxu0 %v1121
        %1194 = vmatpush.bf16.msra.mxu0 %v1113
        %1195 = vmatmul.bf16.gmra.mxu0 %v1143
        %v1196 = vpop.f32.mrf.mxu0
        %v1197 = vadd.f32 0.0, %v1196
        %v1198 = vpop.f32.mrf.mxu0
        %v1199 = vadd.f32 0.0, %v1198
        %1200 = vdwg.mxu0
        %1201 = vmatpush.bf16.msra.mxu0 0
        %1202 = vmatpush.bf16.msra.mxu0 0
        %1203 = vmatpush.bf16.msra.mxu0 0
        %1204 = vmatpush.bf16.msra.mxu0 0
        %1205 = vmatpush.bf16.msra.mxu0 0
        %1206 = vmatpush.bf16.msra.mxu0 0
        %1207 = vmatpush.bf16.msra.mxu0 %v1122
        %1208 = vmatpush.bf16.msra.mxu0 %v1114
        %1209 = vmatmul.bf16.gmra.mxu0 %v1143
        %v1210 = vpop.f32.mrf.mxu0
        %v1211 = vadd.f32 0.0, %v1210
        %v1212 = vpop.f32.mrf.mxu0
        %v1213 = vadd.f32 0.0, %v1212
        %1214 = vdwg.mxu0
        %1215 = vmatpush.bf16.msra.mxu0 0
        %1216 = vmatpush.bf16.msra.mxu0 0
        %1217 = vmatpush.bf16.msra.mxu0 0
        %1218 = vmatpush.bf16.msra.mxu0 0
        %1219 = vmatpush.bf16.msra.mxu0 0
        %1220 = vmatpush.bf16.msra.mxu0 0
        %1221 = vmatpush.bf16.msra.mxu0 %v1123
        %1222 = vmatpush.bf16.msra.mxu0 %v1115
        %1223 = vmatmul.bf16.gmra.mxu0 %v1143
        %v1224 = vpop.f32.mrf.mxu0
        %v1225 = vadd.f32 0.0, %v1224
        %v1226 = vpop.f32.mrf.mxu0
        %v1227 = vadd.f32 0.0, %v1226
        %1228 = vdwg.mxu0
        %1229 = vmatpush.bf16.msra.mxu0 0
        %1230 = vmatpush.bf16.msra.mxu0 0
        %1231 = vmatpush.bf16.msra.mxu0 0
        %1232 = vmatpush.bf16.msra.mxu0 0
        %1233 = vmatpush.bf16.msra.mxu0 0
        %1234 = vmatpush.bf16.msra.mxu0 0
        %1235 = vmatpush.bf16.msra.mxu0 %v1124
        %1236 = vmatpush.bf16.msra.mxu0 %v1116
        %1237 = vmatmul.bf16.gmra.mxu0 %v1143
        %v1238 = vpop.f32.mrf.mxu0
        %v1239 = vadd.f32 0.0, %v1238
        %v1240 = vpop.f32.mrf.mxu0
        %v1241 = vadd.f32 0.0, %v1240
        %1242 = vdwg.mxu0
        %1243 = vmatpush.bf16.msra.mxu0 0
        %1244 = vmatpush.bf16.msra.mxu0 0
        %1245 = vmatpush.bf16.msra.mxu0 0
        %1246 = vmatpush.bf16.msra.mxu0 0
        %1247 = vmatpush.bf16.msra.mxu0 0
        %1248 = vmatpush.bf16.msra.mxu0 0
        %1249 = vmatpush.bf16.msra.mxu0 %v1125
        %1250 = vmatpush.bf16.msra.mxu0 %v1117
        %1251 = vmatmul.bf16.gmra.mxu0 %v1143
        %v1252 = vpop.f32.mrf.mxu0
        %v1253 = vadd.f32 0.0, %v1252
        %v1254 = vpop.f32.mrf.mxu0
        %v1255 = vadd.f32 0.0, %v1254
        %1256 = vdwg.mxu0
        %v1257 = vmul.f32 %v1155, %v925
        %v1258 = vmul.f32 %v1169, %v939
        %v1259 = vmul.f32 %v1183, %v953
        %v1260 = vmul.f32 %v1197, %v967
        %v1261 = vmul.f32 %v1211, %v981
        %v1262 = vmul.f32 %v1225, %v995
        %v1263 = vmul.f32 %v1239, %v1009
        %v1264 = vmul.f32 %v1253, %v1023
        %v1265 = vmul.f32 %v1157, %v927
        %v1266 = vmul.f32 %v1171, %v941
        %v1267 = vmul.f32 %v1185, %v955
        %v1268 = vmul.f32 %v1199, %v969
        %v1269 = vmul.f32 %v1213, %v983
        %v1270 = vmul.f32 %v1227, %v997
        %v1271 = vmul.f32 %v1241, %v1011
        %v1272 = vmul.f32 %v1255, %v1025
        %v1273 = vpack.c.bf16 %v1265, %v1257
        %v1274 = vpack.c.bf16 %v1266, %v1258
        %v1275 = vpack.c.bf16 %v1267, %v1259
        %v1276 = vpack.c.bf16 %v1268, %v1260
        %v1277 = vpack.c.bf16 %v1269, %v1261
        %v1278 = vpack.c.bf16 %v1270, %v1262
        %v1279 = vpack.c.bf16 %v1271, %v1263
        %v1280 = vpack.c.bf16 %v1272, %v1264
        %v1281 = vld [vmem:[%s9] sm:$0xf]
        %v1282 = vld [vmem:[%s9 + $0x4] sm:$0xf]
        %v1283 = vld [vmem:[%s9 + $0x8] sm:$0xf]
        %v1284 = vld [vmem:[%s9 + $0xc] sm:$0xf]
        %v1285 = vld [vmem:[%s9 + $0x10] sm:$0xf]
        %v1286 = vld [vmem:[%s9 + $0x14] sm:$0xf]
        %v1287 = vld [vmem:[%s9 + $0x18] sm:$0xf]
        %v1288 = vld [vmem:[%s9 + $0x1c] sm:$0xf]
        %v1289 = vld [vmem:[%s9 + $0x20] sm:$0xf]
        %v1290 = vld [vmem:[%s9 + $0x24] sm:$0xf]
        %v1291 = vld [vmem:[%s9 + $0x28] sm:$0xf]
        %v1292 = vld [vmem:[%s9 + $0x2c] sm:$0xf]
        %v1293 = vld [vmem:[%s9 + $0x30] sm:$0xf]
        %v1294 = vld [vmem:[%s9 + $0x34] sm:$0xf]
        %v1295 = vld [vmem:[%s9 + $0x38] sm:$0xf]
        %v1296 = vld [vmem:[%s9 + $0x3c] sm:$0xf]
        %v1297 = vld [vmem:[%s9 + $0x40] sm:$0xf]
        %v1298 = vld [vmem:[%s9 + $0x44] sm:$0xf]
        %v1299 = vld [vmem:[%s9 + $0x48] sm:$0xf]
        %v1300 = vld [vmem:[%s9 + $0x4c] sm:$0xf]
        %v1301 = vld [vmem:[%s9 + $0x50] sm:$0xf]
        %v1302 = vld [vmem:[%s9 + $0x54] sm:$0xf]
        %v1303 = vld [vmem:[%s9 + $0x58] sm:$0xf]
        %v1304 = vld [vmem:[%s9 + $0x5c] sm:$0xf]
        %v1305 = vld [vmem:[%s9 + $0x60] sm:$0xf]
        %v1306 = vld [vmem:[%s9 + $0x64] sm:$0xf]
        %v1307 = vld [vmem:[%s9 + $0x68] sm:$0xf]
        %v1308 = vld [vmem:[%s9 + $0x6c] sm:$0xf]
        %v1309 = vld [vmem:[%s9 + $0x70] sm:$0xf]
        %v1310 = vld [vmem:[%s9 + $0x74] sm:$0xf]
        %v1311 = vld [vmem:[%s9 + $0x78] sm:$0xf]
        %v1312 = vld [vmem:[%s9 + $0x7c] sm:$0xf]
        %v1313 = vld [vmem:[%s9 + $0x80] sm:$0xf]
        %v1314 = vld [vmem:[%s9 + $0x84] sm:$0xf]
        %v1315 = vld [vmem:[%s9 + $0x88] sm:$0xf]
        %v1316 = vld [vmem:[%s9 + $0x8c] sm:$0xf]
        %v1317 = vld [vmem:[%s9 + $0x90] sm:$0xf]
        %v1318 = vld [vmem:[%s9 + $0x94] sm:$0xf]
        %v1319 = vld [vmem:[%s9 + $0x98] sm:$0xf]
        %v1320 = vld [vmem:[%s9 + $0x9c] sm:$0xf]
        %v1321 = vld [vmem:[%s9 + $0xa0] sm:$0xf]
        %v1322 = vld [vmem:[%s9 + $0xa4] sm:$0xf]
        %v1323 = vld [vmem:[%s9 + $0xa8] sm:$0xf]
        %v1324 = vld [vmem:[%s9 + $0xac] sm:$0xf]
        %v1325 = vld [vmem:[%s9 + $0xb0] sm:$0xf]
        %v1326 = vld [vmem:[%s9 + $0xb4] sm:$0xf]
        %v1327 = vld [vmem:[%s9 + $0xb8] sm:$0xf]
        %v1328 = vld [vmem:[%s9 + $0xbc] sm:$0xf]
        %v1329 = vld [vmem:[%s9 + $0xc0] sm:$0xf]
        %v1330 = vld [vmem:[%s9 + $0xc4] sm:$0xf]
        %v1331 = vld [vmem:[%s9 + $0xc8] sm:$0xf]
        %v1332 = vld [vmem:[%s9 + $0xcc] sm:$0xf]
        %v1333 = vld [vmem:[%s9 + $0xd0] sm:$0xf]
        %v1334 = vld [vmem:[%s9 + $0xd4] sm:$0xf]
        %v1335 = vld [vmem:[%s9 + $0xd8] sm:$0xf]
        %v1336 = vld [vmem:[%s9 + $0xdc] sm:$0xf]
        %v1337 = vld [vmem:[%s9 + $0xe0] sm:$0xf]
        %v1338 = vld [vmem:[%s9 + $0xe4] sm:$0xf]
        %v1339 = vld [vmem:[%s9 + $0xe8] sm:$0xf]
        %v1340 = vld [vmem:[%s9 + $0xec] sm:$0xf]
        %v1341 = vld [vmem:[%s9 + $0xf0] sm:$0xf]
        %v1342 = vld [vmem:[%s9 + $0xf4] sm:$0xf]
        %v1343 = vld [vmem:[%s9 + $0xf8] sm:$0xf]
        %v1344 = vld [vmem:[%s9 + $0xfc] sm:$0xf]
        %v1345 = vld [vmem:[%s9 + $0x100] sm:$0xf]
        %v1346 = vld [vmem:[%s9 + $0x104] sm:$0xf]
        %v1347 = vld [vmem:[%s9 + $0x108] sm:$0xf]
        %v1348 = vld [vmem:[%s9 + $0x10c] sm:$0xf]
        %v1349 = vld [vmem:[%s9 + $0x110] sm:$0xf]
        %v1350 = vld [vmem:[%s9 + $0x114] sm:$0xf]
        %v1351 = vld [vmem:[%s9 + $0x118] sm:$0xf]
        %v1352 = vld [vmem:[%s9 + $0x11c] sm:$0xf]
        %v1353 = vld [vmem:[%s9 + $0x120] sm:$0xf]
        %v1354 = vld [vmem:[%s9 + $0x124] sm:$0xf]
        %v1355 = vld [vmem:[%s9 + $0x128] sm:$0xf]
        %v1356 = vld [vmem:[%s9 + $0x12c] sm:$0xf]
        %v1357 = vld [vmem:[%s9 + $0x130] sm:$0xf]
        %v1358 = vld [vmem:[%s9 + $0x134] sm:$0xf]
        %v1359 = vld [vmem:[%s9 + $0x138] sm:$0xf]
        %v1360 = vld [vmem:[%s9 + $0x13c] sm:$0xf]
        %v1361 = vld [vmem:[%s9 + $0x140] sm:$0xf]
        %v1362 = vld [vmem:[%s9 + $0x144] sm:$0xf]
        %v1363 = vld [vmem:[%s9 + $0x148] sm:$0xf]
        %v1364 = vld [vmem:[%s9 + $0x14c] sm:$0xf]
        %v1365 = vld [vmem:[%s9 + $0x150] sm:$0xf]
        %v1366 = vld [vmem:[%s9 + $0x154] sm:$0xf]
        %v1367 = vld [vmem:[%s9 + $0x158] sm:$0xf]
        %v1368 = vld [vmem:[%s9 + $0x15c] sm:$0xf]
        %v1369 = vld [vmem:[%s9 + $0x160] sm:$0xf]
        %v1370 = vld [vmem:[%s9 + $0x164] sm:$0xf]
        %v1371 = vld [vmem:[%s9 + $0x168] sm:$0xf]
        %v1372 = vld [vmem:[%s9 + $0x16c] sm:$0xf]
        %v1373 = vld [vmem:[%s9 + $0x170] sm:$0xf]
        %v1374 = vld [vmem:[%s9 + $0x174] sm:$0xf]
        %v1375 = vld [vmem:[%s9 + $0x178] sm:$0xf]
        %v1376 = vld [vmem:[%s9 + $0x17c] sm:$0xf]
        %v1377 = vld [vmem:[%s9 + $0x180] sm:$0xf]
        %v1378 = vld [vmem:[%s9 + $0x184] sm:$0xf]
        %v1379 = vld [vmem:[%s9 + $0x188] sm:$0xf]
        %v1380 = vld [vmem:[%s9 + $0x18c] sm:$0xf]
        %v1381 = vld [vmem:[%s9 + $0x190] sm:$0xf]
        %v1382 = vld [vmem:[%s9 + $0x194] sm:$0xf]
        %v1383 = vld [vmem:[%s9 + $0x198] sm:$0xf]
        %v1384 = vld [vmem:[%s9 + $0x19c] sm:$0xf]
        %v1385 = vld [vmem:[%s9 + $0x1a0] sm:$0xf]
        %v1386 = vld [vmem:[%s9 + $0x1a4] sm:$0xf]
        %v1387 = vld [vmem:[%s9 + $0x1a8] sm:$0xf]
        %v1388 = vld [vmem:[%s9 + $0x1ac] sm:$0xf]
        %v1389 = vld [vmem:[%s9 + $0x1b0] sm:$0xf]
        %v1390 = vld [vmem:[%s9 + $0x1b4] sm:$0xf]
        %v1391 = vld [vmem:[%s9 + $0x1b8] sm:$0xf]
        %v1392 = vld [vmem:[%s9 + $0x1bc] sm:$0xf]
        %v1393 = vld [vmem:[%s9 + $0x1c0] sm:$0xf]
        %v1394 = vld [vmem:[%s9 + $0x1c4] sm:$0xf]
        %v1395 = vld [vmem:[%s9 + $0x1c8] sm:$0xf]
        %v1396 = vld [vmem:[%s9 + $0x1cc] sm:$0xf]
        %v1397 = vld [vmem:[%s9 + $0x1d0] sm:$0xf]
        %v1398 = vld [vmem:[%s9 + $0x1d4] sm:$0xf]
        %v1399 = vld [vmem:[%s9 + $0x1d8] sm:$0xf]
        %v1400 = vld [vmem:[%s9 + $0x1dc] sm:$0xf]
        %v1401 = vld [vmem:[%s9 + $0x1e0] sm:$0xf]
        %v1402 = vld [vmem:[%s9 + $0x1e4] sm:$0xf]
        %v1403 = vld [vmem:[%s9 + $0x1e8] sm:$0xf]
        %v1404 = vld [vmem:[%s9 + $0x1ec] sm:$0xf]
        %v1405 = vld [vmem:[%s9 + $0x1f0] sm:$0xf]
        %v1406 = vld [vmem:[%s9 + $0x1f4] sm:$0xf]
        %v1407 = vld [vmem:[%s9 + $0x1f8] sm:$0xf]
        %v1408 = vld [vmem:[%s9 + $0x1fc] sm:$0xf]
        %v1537 = vunpack.c.l.b16 %v1281
        %v1538 = vunpack.c.l.b16 %v1282
        %v1539 = vunpack.c.l.b16 %v1283
        %v1540 = vunpack.c.l.b16 %v1284
        %v1541 = vunpack.c.l.b16 %v1285
        %v1542 = vunpack.c.l.b16 %v1286
        %v1543 = vunpack.c.l.b16 %v1287
        %v1544 = vunpack.c.l.b16 %v1288
        %v1545 = vunpack.c.l.b16 %v1289
        %v1546 = vunpack.c.l.b16 %v1290
        %v1547 = vunpack.c.l.b16 %v1291
        %v1548 = vunpack.c.l.b16 %v1292
        %v1549 = vunpack.c.l.b16 %v1293
        %v1550 = vunpack.c.l.b16 %v1294
        %v1551 = vunpack.c.l.b16 %v1295
        %v1552 = vunpack.c.l.b16 %v1296
        %v1553 = vunpack.c.l.b16 %v1297
        %v1554 = vunpack.c.l.b16 %v1298
        %v1555 = vunpack.c.l.b16 %v1299
        %v1556 = vunpack.c.l.b16 %v1300
        %v1557 = vunpack.c.l.b16 %v1301
        %v1558 = vunpack.c.l.b16 %v1302
        %v1559 = vunpack.c.l.b16 %v1303
        %v1560 = vunpack.c.l.b16 %v1304
        %v1561 = vunpack.c.l.b16 %v1305
        %v1562 = vunpack.c.l.b16 %v1306
        %v1563 = vunpack.c.l.b16 %v1307
        %v1564 = vunpack.c.l.b16 %v1308
        %v1565 = vunpack.c.l.b16 %v1309
        %v1566 = vunpack.c.l.b16 %v1310
        %v1567 = vunpack.c.l.b16 %v1311
        %v1568 = vunpack.c.l.b16 %v1312
        %v1569 = vunpack.c.l.b16 %v1313
        %v1570 = vunpack.c.l.b16 %v1314
        %v1571 = vunpack.c.l.b16 %v1315
        %v1572 = vunpack.c.l.b16 %v1316
        %v1573 = vunpack.c.l.b16 %v1317
        %v1574 = vunpack.c.l.b16 %v1318
        %v1575 = vunpack.c.l.b16 %v1319
        %v1576 = vunpack.c.l.b16 %v1320
        %v1577 = vunpack.c.l.b16 %v1321
        %v1578 = vunpack.c.l.b16 %v1322
        %v1579 = vunpack.c.l.b16 %v1323
        %v1580 = vunpack.c.l.b16 %v1324
        %v1581 = vunpack.c.l.b16 %v1325
        %v1582 = vunpack.c.l.b16 %v1326
        %v1583 = vunpack.c.l.b16 %v1327
        %v1584 = vunpack.c.l.b16 %v1328
        %v1585 = vunpack.c.l.b16 %v1329
        %v1586 = vunpack.c.l.b16 %v1330
        %v1587 = vunpack.c.l.b16 %v1331
        %v1588 = vunpack.c.l.b16 %v1332
        %v1589 = vunpack.c.l.b16 %v1333
        %v1590 = vunpack.c.l.b16 %v1334
        %v1591 = vunpack.c.l.b16 %v1335
        %v1592 = vunpack.c.l.b16 %v1336
        %v1593 = vunpack.c.l.b16 %v1337
        %v1594 = vunpack.c.l.b16 %v1338
        %v1595 = vunpack.c.l.b16 %v1339
        %v1596 = vunpack.c.l.b16 %v1340
        %v1597 = vunpack.c.l.b16 %v1341
        %v1598 = vunpack.c.l.b16 %v1342
        %v1599 = vunpack.c.l.b16 %v1343
        %v1600 = vunpack.c.l.b16 %v1344
        %v1601 = vunpack.c.l.b16 %v1345
        %v1602 = vunpack.c.l.b16 %v1346
        %v1603 = vunpack.c.l.b16 %v1347
        %v1604 = vunpack.c.l.b16 %v1348
        %v1605 = vunpack.c.l.b16 %v1349
        %v1606 = vunpack.c.l.b16 %v1350
        %v1607 = vunpack.c.l.b16 %v1351
        %v1608 = vunpack.c.l.b16 %v1352
        %v1609 = vunpack.c.l.b16 %v1353
        %v1610 = vunpack.c.l.b16 %v1354
        %v1611 = vunpack.c.l.b16 %v1355
        %v1612 = vunpack.c.l.b16 %v1356
        %v1613 = vunpack.c.l.b16 %v1357
        %v1614 = vunpack.c.l.b16 %v1358
        %v1615 = vunpack.c.l.b16 %v1359
        %v1616 = vunpack.c.l.b16 %v1360
        %v1617 = vunpack.c.l.b16 %v1361
        %v1618 = vunpack.c.l.b16 %v1362
        %v1619 = vunpack.c.l.b16 %v1363
        %v1620 = vunpack.c.l.b16 %v1364
        %v1621 = vunpack.c.l.b16 %v1365
        %v1622 = vunpack.c.l.b16 %v1366
        %v1623 = vunpack.c.l.b16 %v1367
        %v1624 = vunpack.c.l.b16 %v1368
        %v1625 = vunpack.c.l.b16 %v1369
        %v1626 = vunpack.c.l.b16 %v1370
        %v1627 = vunpack.c.l.b16 %v1371
        %v1628 = vunpack.c.l.b16 %v1372
        %v1629 = vunpack.c.l.b16 %v1373
        %v1630 = vunpack.c.l.b16 %v1374
        %v1631 = vunpack.c.l.b16 %v1375
        %v1632 = vunpack.c.l.b16 %v1376
        %v1633 = vunpack.c.l.b16 %v1377
        %v1634 = vunpack.c.l.b16 %v1378
        %v1635 = vunpack.c.l.b16 %v1379
        %v1636 = vunpack.c.l.b16 %v1380
        %v1637 = vunpack.c.l.b16 %v1381
        %v1638 = vunpack.c.l.b16 %v1382
        %v1639 = vunpack.c.l.b16 %v1383
        %v1640 = vunpack.c.l.b16 %v1384
        %v1641 = vunpack.c.l.b16 %v1385
        %v1642 = vunpack.c.l.b16 %v1386
        %v1643 = vunpack.c.l.b16 %v1387
        %v1644 = vunpack.c.l.b16 %v1388
        %v1645 = vunpack.c.l.b16 %v1389
        %v1646 = vunpack.c.l.b16 %v1390
        %v1647 = vunpack.c.l.b16 %v1391
        %v1648 = vunpack.c.l.b16 %v1392
        %v1649 = vunpack.c.l.b16 %v1393
        %v1650 = vunpack.c.l.b16 %v1394
        %v1651 = vunpack.c.l.b16 %v1395
        %v1652 = vunpack.c.l.b16 %v1396
        %v1653 = vunpack.c.l.b16 %v1397
        %v1654 = vunpack.c.l.b16 %v1398
        %v1655 = vunpack.c.l.b16 %v1399
        %v1656 = vunpack.c.l.b16 %v1400
        %v1657 = vunpack.c.l.b16 %v1401
        %v1658 = vunpack.c.l.b16 %v1402
        %v1659 = vunpack.c.l.b16 %v1403
        %v1660 = vunpack.c.l.b16 %v1404
        %v1661 = vunpack.c.l.b16 %v1405
        %v1662 = vunpack.c.l.b16 %v1406
        %v1663 = vunpack.c.l.b16 %v1407
        %v1664 = vunpack.c.l.b16 %v1408
        %v1665 = vpack.c.b16 %v1538, %v1537
        %v1666 = vpack.c.b16 %v1540, %v1539
        %v1667 = vpack.c.b16 %v1542, %v1541
        %v1668 = vpack.c.b16 %v1544, %v1543
        %v1669 = vpack.c.b16 %v1546, %v1545
        %v1670 = vpack.c.b16 %v1548, %v1547
        %v1671 = vpack.c.b16 %v1550, %v1549
        %v1672 = vpack.c.b16 %v1552, %v1551
        %v1673 = vpack.c.b16 %v1554, %v1553
        %v1674 = vpack.c.b16 %v1556, %v1555
        %v1675 = vpack.c.b16 %v1558, %v1557
        %v1676 = vpack.c.b16 %v1560, %v1559
        %v1677 = vpack.c.b16 %v1562, %v1561
        %v1678 = vpack.c.b16 %v1564, %v1563
        %v1679 = vpack.c.b16 %v1566, %v1565
        %v1680 = vpack.c.b16 %v1568, %v1567
        %v1681 = vpack.c.b16 %v1570, %v1569
        %v1682 = vpack.c.b16 %v1572, %v1571
        %v1683 = vpack.c.b16 %v1574, %v1573
        %v1684 = vpack.c.b16 %v1576, %v1575
        %v1685 = vpack.c.b16 %v1578, %v1577
        %v1686 = vpack.c.b16 %v1580, %v1579
        %v1687 = vpack.c.b16 %v1582, %v1581
        %v1688 = vpack.c.b16 %v1584, %v1583
        %v1689 = vpack.c.b16 %v1586, %v1585
        %v1690 = vpack.c.b16 %v1588, %v1587
        %v1691 = vpack.c.b16 %v1590, %v1589
        %v1692 = vpack.c.b16 %v1592, %v1591
        %v1693 = vpack.c.b16 %v1594, %v1593
        %v1694 = vpack.c.b16 %v1596, %v1595
        %v1695 = vpack.c.b16 %v1598, %v1597
        %v1696 = vpack.c.b16 %v1600, %v1599
        %v1697 = vpack.c.b16 %v1602, %v1601
        %v1698 = vpack.c.b16 %v1604, %v1603
        %v1699 = vpack.c.b16 %v1606, %v1605
        %v1700 = vpack.c.b16 %v1608, %v1607
        %v1701 = vpack.c.b16 %v1610, %v1609
        %v1702 = vpack.c.b16 %v1612, %v1611
        %v1703 = vpack.c.b16 %v1614, %v1613
        %v1704 = vpack.c.b16 %v1616, %v1615
        %v1705 = vpack.c.b16 %v1618, %v1617
        %v1706 = vpack.c.b16 %v1620, %v1619
        %v1707 = vpack.c.b16 %v1622, %v1621
        %v1708 = vpack.c.b16 %v1624, %v1623
        %v1709 = vpack.c.b16 %v1626, %v1625
        %v1710 = vpack.c.b16 %v1628, %v1627
        %v1711 = vpack.c.b16 %v1630, %v1629
        %v1712 = vpack.c.b16 %v1632, %v1631
        %v1713 = vpack.c.b16 %v1634, %v1633
        %v1714 = vpack.c.b16 %v1636, %v1635
        %v1715 = vpack.c.b16 %v1638, %v1637
        %v1716 = vpack.c.b16 %v1640, %v1639
        %v1717 = vpack.c.b16 %v1642, %v1641
        %v1718 = vpack.c.b16 %v1644, %v1643
        %v1719 = vpack.c.b16 %v1646, %v1645
        %v1720 = vpack.c.b16 %v1648, %v1647
        %v1721 = vpack.c.b16 %v1650, %v1649
        %v1722 = vpack.c.b16 %v1652, %v1651
        %v1723 = vpack.c.b16 %v1654, %v1653
        %v1724 = vpack.c.b16 %v1656, %v1655
        %v1725 = vpack.c.b16 %v1658, %v1657
        %v1726 = vpack.c.b16 %v1660, %v1659
        %v1727 = vpack.c.b16 %v1662, %v1661
        %v1728 = vpack.c.b16 %v1664, %v1663
        %1793 = vmatpush.bf16.msra.mxu0 %v1672
        %1794 = vmatpush.bf16.msra.mxu0 %v1671
        %1795 = vmatpush.bf16.msra.mxu0 %v1670
        %1796 = vmatpush.bf16.msra.mxu0 %v1669
        %1797 = vmatpush.bf16.msra.mxu0 %v1668
        %1798 = vmatpush.bf16.msra.mxu0 %v1667
        %1799 = vmatpush.bf16.msra.mxu0 %v1666
        %1800 = vmatpush.bf16.msra.mxu0 %v1665
        %1801 = vmatmul.bf16.gmra.mxu0 %v1273
        %v1802 = vpop.f32.mrf.mxu0
        %v1803 = vadd.f32 0.0, %v1802
        %v1804 = vpop.f32.mrf.mxu0
        %v1805 = vadd.f32 0.0, %v1804
        %1806 = vdwg.mxu0
        %1807 = vmatpush.bf16.msra.mxu0 %v1680
        %1808 = vmatpush.bf16.msra.mxu0 %v1679
        %1809 = vmatpush.bf16.msra.mxu0 %v1678
        %1810 = vmatpush.bf16.msra.mxu0 %v1677
        %1811 = vmatpush.bf16.msra.mxu0 %v1676
        %1812 = vmatpush.bf16.msra.mxu0 %v1675
        %1813 = vmatpush.bf16.msra.mxu0 %v1674
        %1814 = vmatpush.bf16.msra.mxu0 %v1673
        %1815 = vmatmul.bf16.gmra.mxu0 %v1274
        %v1816 = vpop.f32.mrf.mxu0
        %v1817 = vadd.f32 %v1803, %v1816
        %v1818 = vpop.f32.mrf.mxu0
        %v1819 = vadd.f32 %v1805, %v1818
        %1820 = vdwg.mxu0
        %1821 = vmatpush.bf16.msra.mxu0 %v1688
        %1822 = vmatpush.bf16.msra.mxu0 %v1687
        %1823 = vmatpush.bf16.msra.mxu0 %v1686
        %1824 = vmatpush.bf16.msra.mxu0 %v1685
        %1825 = vmatpush.bf16.msra.mxu0 %v1684
        %1826 = vmatpush.bf16.msra.mxu0 %v1683
        %1827 = vmatpush.bf16.msra.mxu0 %v1682
        %1828 = vmatpush.bf16.msra.mxu0 %v1681
        %1829 = vmatmul.bf16.gmra.mxu0 %v1275
        %v1830 = vpop.f32.mrf.mxu0
        %v1831 = vadd.f32 %v1817, %v1830
        %v1832 = vpop.f32.mrf.mxu0
        %v1833 = vadd.f32 %v1819, %v1832
        %1834 = vdwg.mxu0
        %1835 = vmatpush.bf16.msra.mxu0 %v1696
        %1836 = vmatpush.bf16.msra.mxu0 %v1695
        %1837 = vmatpush.bf16.msra.mxu0 %v1694
        %1838 = vmatpush.bf16.msra.mxu0 %v1693
        %1839 = vmatpush.bf16.msra.mxu0 %v1692
        %1840 = vmatpush.bf16.msra.mxu0 %v1691
        %1841 = vmatpush.bf16.msra.mxu0 %v1690
        %1842 = vmatpush.bf16.msra.mxu0 %v1689
        %1843 = vmatmul.bf16.gmra.mxu0 %v1276
        %v1844 = vpop.f32.mrf.mxu0
        %v1845 = vadd.f32 %v1831, %v1844
        %v1846 = vpop.f32.mrf.mxu0
        %v1847 = vadd.f32 %v1833, %v1846
        %1848 = vdwg.mxu0
        %1849 = vmatpush.bf16.msra.mxu0 %v1704
        %1850 = vmatpush.bf16.msra.mxu0 %v1703
        %1851 = vmatpush.bf16.msra.mxu0 %v1702
        %1852 = vmatpush.bf16.msra.mxu0 %v1701
        %1853 = vmatpush.bf16.msra.mxu0 %v1700
        %1854 = vmatpush.bf16.msra.mxu0 %v1699
        %1855 = vmatpush.bf16.msra.mxu0 %v1698
        %1856 = vmatpush.bf16.msra.mxu0 %v1697
        %1857 = vmatmul.bf16.gmra.mxu0 %v1277
        %v1858 = vpop.f32.mrf.mxu0
        %v1859 = vadd.f32 %v1845, %v1858
        %v1860 = vpop.f32.mrf.mxu0
        %v1861 = vadd.f32 %v1847, %v1860
        %1862 = vdwg.mxu0
        %1863 = vmatpush.bf16.msra.mxu0 %v1712
        %1864 = vmatpush.bf16.msra.mxu0 %v1711
        %1865 = vmatpush.bf16.msra.mxu0 %v1710
        %1866 = vmatpush.bf16.msra.mxu0 %v1709
        %1867 = vmatpush.bf16.msra.mxu0 %v1708
        %1868 = vmatpush.bf16.msra.mxu0 %v1707
        %1869 = vmatpush.bf16.msra.mxu0 %v1706
        %1870 = vmatpush.bf16.msra.mxu0 %v1705
        %1871 = vmatmul.bf16.gmra.mxu0 %v1278
        %v1872 = vpop.f32.mrf.mxu0
        %v1873 = vadd.f32 %v1859, %v1872
        %v1874 = vpop.f32.mrf.mxu0
        %v1875 = vadd.f32 %v1861, %v1874
        %1876 = vdwg.mxu0
        %1877 = vmatpush.bf16.msra.mxu0 %v1720
        %1878 = vmatpush.bf16.msra.mxu0 %v1719
        %1879 = vmatpush.bf16.msra.mxu0 %v1718
        %1880 = vmatpush.bf16.msra.mxu0 %v1717
        %1881 = vmatpush.bf16.msra.mxu0 %v1716
        %1882 = vmatpush.bf16.msra.mxu0 %v1715
        %1883 = vmatpush.bf16.msra.mxu0 %v1714
        %1884 = vmatpush.bf16.msra.mxu0 %v1713
        %1885 = vmatmul.bf16.gmra.mxu0 %v1279
        %v1886 = vpop.f32.mrf.mxu0
        %v1887 = vadd.f32 %v1873, %v1886
        %v1888 = vpop.f32.mrf.mxu0
        %v1889 = vadd.f32 %v1875, %v1888
        %1890 = vdwg.mxu0
        %1891 = vmatpush.bf16.msra.mxu0 %v1728
        %1892 = vmatpush.bf16.msra.mxu0 %v1727
        %1893 = vmatpush.bf16.msra.mxu0 %v1726
        %1894 = vmatpush.bf16.msra.mxu0 %v1725
        %1895 = vmatpush.bf16.msra.mxu0 %v1724
        %1896 = vmatpush.bf16.msra.mxu0 %v1723
        %1897 = vmatpush.bf16.msra.mxu0 %v1722
        %1898 = vmatpush.bf16.msra.mxu0 %v1721
        %1899 = vmatmul.bf16.gmra.mxu0 %v1280
        %v1900 = vpop.f32.mrf.mxu0
        %v1901 = vadd.f32 %v1887, %v1900
        %v1902 = vpop.f32.mrf.mxu0
        %v1903 = vadd.f32 %v1889, %v1902
        %1904 = vdwg.mxu0
        %v1905 = vld [vmem:[#allocation3] sm:$0xff]
        %v1906 = vld [vmem:[#allocation3 + $0x8] sm:$0xff]
        %v1907 = vpack.c.bf16 %v1903, %v1901
        %1908 = vxpose.xlu0.c.b16.start [1/8] %v759, 128
        %1909 = vxpose.xlu0.c.b16.cont [2/8] 0, 128
        %1910 = vxpose.xlu0.c.b16.cont [3/8] 0, 128
        %1911 = vxpose.xlu0.c.b16.cont [4/8] 0, 128
        %1912 = vxpose.xlu0.c.b16.cont [5/8] 0, 128
        %1913 = vxpose.xlu0.c.b16.cont [6/8] 0, 128
        %1914 = vxpose.xlu0.c.b16.cont [7/8] 0, 128
        %1915 = vxpose.xlu0.c.b16.end [8/8] 0, 128
        %v1916 = vpop.trf.xlu0
        %v1917 = vpop.trf.xlu0
        %v1918 = vpop.trf.xlu0
        %v1919 = vpop.trf.xlu0
        %v1920 = vpop.trf.xlu0
        %v1921 = vpop.trf.xlu0
        %v1922 = vpop.trf.xlu0
        %v1923 = vpop.trf.xlu0
        %v1925 = vsel %vm1027, %v1916, 0
        %1927 = vmatpush.bf16.msra.mxu0 0
        %1928 = vmatpush.bf16.msra.mxu0 0
        %1929 = vmatpush.bf16.msra.mxu0 0
        %1930 = vmatpush.bf16.msra.mxu0 0
        %1931 = vmatpush.bf16.msra.mxu0 0
        %1932 = vmatpush.bf16.msra.mxu0 0
        %1933 = vmatpush.bf16.msra.mxu0 0
        %1934 = vmatpush.bf16.msra.mxu0 %v1907
        %1935 = vmatmul.bf16.gmra.mxu0 %v1925
        %v1936 = vpop.f32.mrf.mxu0
        %v1937 = vadd.f32 0.0, %v1936
        %v1938 = vpop.f32.mrf.mxu0
        %v1939 = vadd.f32 0.0, %v1938
        %1940 = vdwg.mxu0
        %v1941 = vadd.f32 %v1905, %v1937
        %v1942 = vadd.f32 %v1906, %v1939
        %1943 = vst.msk [vmem:[#allocation3] sm:$0xff] %vm911, %v1941
        %1944 = vst.msk [vmem:[#allocation3 + $0x8] sm:$0xff] %vm911, %v1942
        %p1945 = scmp.eq.s32.totalorder %s37, 2
        // Predicated region
        $region109: #{tpu_custom_call.1} parent=99 // pred_check
          %p1946 = pneg %p1945
        $region110: #{tpu_custom_call.1} parent=99 // pred_check_branch
          %1948 = sbr.rel (%p1946) target = $region112
        $region111: #{tpu_custom_call.1} parent=99 // pred_region
          %v1949 = vld [vmem:[#allocation3] sm:$0xff]
          %v1950 = vld [vmem:[#allocation3 + $0x8] sm:$0xff]
          %v1951 = vld [vmem:[%s1] sm:$0xff]
          %v1952 = vld [vmem:[%s1 + $0x8] sm:$0xff]
          %1954 = vset.pattern.permute.xlu0 0
          %1955 = vperm.xlu0 %1954, %v1951
          %v1956 = vpop.permute.xlu0 %1955
          %1959 = vset.pattern.permute.xlu0 0
          %1960 = vperm.xlu0 %1959, %v1952
          %v1961 = vpop.permute.xlu0 %1960
          %v1963 = vmul.f32 %v1949, %v1956
          %v1964 = vmul.f32 %v1950, %v1961
          %v1965 = vld [vmem:[%s10] sm:$0xf]
          %v1966 = vld [vmem:[%s10 + $0x4] sm:$0xf]
          %v1967 = vld [vmem:[%s10 + $0x8] sm:$0xf]
          %v1968 = vld [vmem:[%s10 + $0xc] sm:$0xf]
          %v1973 = vunpack.c.l.b16 %v1965
          %v1974 = vunpack.c.l.b16 %v1966
          %v1975 = vunpack.c.l.b16 %v1967
          %v1976 = vunpack.c.l.b16 %v1968
          %v1977 = vpack.c.b16 %v1974, %v1973
          %v1978 = vpack.c.b16 %v1976, %v1975
          %v1982 = vsel %vm911, %v731, 0
          %1984 = vmatpush.bf16.msra.mxu0 0
          %1985 = vmatpush.bf16.msra.mxu0 0
          %1986 = vmatpush.bf16.msra.mxu0 0
          %1987 = vmatpush.bf16.msra.mxu0 0
          %1988 = vmatpush.bf16.msra.mxu0 0
          %1989 = vmatpush.bf16.msra.mxu0 0
          %1990 = vmatpush.bf16.msra.mxu0 %v1978
          %1991 = vmatpush.bf16.msra.mxu0 %v1977
          %1992 = vmatmul.bf16.gmra.mxu0 %v1982
          %v1993 = vpop.f32.mrf.mxu0
          %v1994 = vadd.f32 0.0, %v1993
          %v1995 = vpop.f32.mrf.mxu0
          %v1996 = vadd.f32 0.0, %v1995
          %1997 = vdwg.mxu0
          %v1998 = vadd.f32 %v1963, %v1994
          %v1999 = vadd.f32 %v1964, %v1996
          %v2000 = vld [vmem:[%s12] sm:$0x1]
          %v2002 = vperm.slane %v2000, 0
          %v2004 = vadd.f32 %v1998, %v2002
          %v2005 = vadd.f32 %v1999, %v2002
          %v2006 = vmax.f32 %v2004, 0.0
          %v2007 = vmax.f32 %v2005, 0.0
          %v2008 = vpack.c.bf16 %v2007, %v2006
          %v2009 = vld [vmem:[%s11] sm:$0xf]
          %v2010 = vld [vmem:[%s11 + $0x4] sm:$0xf]
          %v2011 = vld [vmem:[%s11 + $0x8] sm:$0xf]
          %v2012 = vld [vmem:[%s11 + $0xc] sm:$0xf]
          %v2017 = vunpack.c.l.b16 %v2009
          %v2018 = vunpack.c.l.b16 %v2010
          %v2019 = vunpack.c.l.b16 %v2011
          %v2020 = vunpack.c.l.b16 %v2012
          %v2021 = vpack.c.b16 %v2018, %v2017
          %v2022 = vpack.c.b16 %v2020, %v2019
          %v2026 = vsel %vm911, %v2008, 0
          %2028 = vmatpush.bf16.msra.mxu0 0
          %2029 = vmatpush.bf16.msra.mxu0 0
          %2030 = vmatpush.bf16.msra.mxu0 0
          %2031 = vmatpush.bf16.msra.mxu0 0
          %2032 = vmatpush.bf16.msra.mxu0 0
          %2033 = vmatpush.bf16.msra.mxu0 0
          %2034 = vmatpush.bf16.msra.mxu0 %v2022
          %2035 = vmatpush.bf16.msra.mxu0 %v2021
          %2036 = vmatmul.bf16.gmra.mxu0 %v2026
          %v2037 = vpop.f32.mrf.mxu0
          %v2038 = vadd.f32 0.0, %v2037
          %v2039 = vpop.f32.mrf.mxu0
          %v2040 = vadd.f32 0.0, %v2039
          %2041 = vdwg.mxu0
          %2044 = vrot.lane.b32.xlu0 %v1994, 96
          %v2045 = vpop.permute.xlu0 %2044
          %2046 = vrot.lane.b32.xlu0 %v1996, 96
          %v2047 = vpop.permute.xlu0 %2046
          %v2050 = vadd.f32 %v2038, %v2045
          %v2051 = vadd.f32 %v2040, %v2047
          %v2052 = vld [vmem:[%s13] sm:$0x1]
          %v2054 = vperm.slane %v2052, 0
          %v2056 = vadd.f32 %v2050, %v2054
          %v2057 = vadd.f32 %v2051, %v2054
          %v2058 = vxor.u32 %v2056, 2147483648
          %v2059 = vxor.u32 %v2057, 2147483648
          %v2060 = vmul.f32 %v2058, 1.442695
          %v2061 = vpow.pop %v2060
          %v2062 = vmul.f32 %v2059, 1.442695
          %v2063 = vpow.pop %v2062
          %v2064 = vadd.f32 %v2061, 1.0
          %v2065 = vadd.f32 %v2063, 1.0
          %v2066 = vrcp.pop %v2064
          %v2067 = vmul.f32 %v2064, %v2066
          %v2068 = vsub.f32 1.0, %v2067
          %v2069 = vmul.f32 %v2066, %v2068
          %v2070 = vadd.f32 %v2066, %v2069
          %vm2071 = vweird.f32 %v2064
          %vm2072 = vweird.f32 %v2066
          %vm2073 = vmor %vm2071, %vm2072
          %v2074 = vsel %vm2073, %v2066, %v2070
          %v2075 = vand.u32 2147483647, %v2064
          %vm2076 = vcmp.eq.f32.partialorder %v2075, 8.507059e+37
          %v2077 = vand.u32 %v2064, 2147483648
          %v2078 = vor.u32 1.1754944e-38, %v2077
          %v2079 = vsel %vm2076, %v2078, %v2074
          %v2080 = vmul.f32 1.0, %v2079
          %v2081 = vrcp.pop %v2065
          %v2082 = vmul.f32 %v2065, %v2081
          %v2083 = vsub.f32 1.0, %v2082
          %v2084 = vmul.f32 %v2081, %v2083
          %v2085 = vadd.f32 %v2081, %v2084
          %vm2086 = vweird.f32 %v2065
          %vm2087 = vweird.f32 %v2081
          %vm2088 = vmor %vm2086, %vm2087
          %v2089 = vsel %vm2088, %v2081, %v2085
          %v2090 = vand.u32 2147483647, %v2065
          %vm2091 = vcmp.eq.f32.partialorder %v2090, 8.507059e+37
          %v2092 = vand.u32 %v2065, 2147483648
          %v2093 = vor.u32 1.1754944e-38, %v2092
          %v2094 = vsel %vm2091, %v2093, %v2089
          %v2095 = vmul.f32 1.0, %v2094
          %v2096 = vld [vmem:[%s14] sm:$0x1]
          %v2098 = vperm.slane %v2096, 0
          %2099 = vrot.lane.b32.xlu0 %v2098, 32
          %v2100 = vpop.permute.xlu0 %2099
          %v2102 = vadd.f32 %v2050, %v2100
          %v2103 = vadd.f32 %v2051, %v2100
          %v2104 = vxor.u32 %v2102, 2147483648
          %v2105 = vxor.u32 %v2103, 2147483648
          %v2106 = vmul.f32 %v2104, 1.442695
          %v2107 = vpow.pop %v2106
          %v2108 = vmul.f32 %v2105, 1.442695
          %v2109 = vpow.pop %v2108
          %v2110 = vadd.f32 %v2107, 1.0
          %v2111 = vadd.f32 %v2109, 1.0
          %v2112 = vrcp.pop %v2110
          %v2113 = vmul.f32 %v2110, %v2112
          %v2114 = vsub.f32 1.0, %v2113
          %v2115 = vmul.f32 %v2112, %v2114
          %v2116 = vadd.f32 %v2112, %v2115
          %vm2117 = vweird.f32 %v2110
          %vm2118 = vweird.f32 %v2112
          %vm2119 = vmor %vm2117, %vm2118
          %v2120 = vsel %vm2119, %v2112, %v2116
          %v2121 = vand.u32 2147483647, %v2110
          %vm2122 = vcmp.eq.f32.partialorder %v2121, 8.507059e+37
          %v2123 = vand.u32 %v2110, 2147483648
          %v2124 = vor.u32 1.1754944e-38, %v2123
          %v2125 = vsel %vm2122, %v2124, %v2120
          %v2126 = vmul.f32 1.0, %v2125
          %v2127 = vrcp.pop %v2111
          %v2128 = vmul.f32 %v2111, %v2127
          %v2129 = vsub.f32 1.0, %v2128
          %v2130 = vmul.f32 %v2127, %v2129
          %v2131 = vadd.f32 %v2127, %v2130
          %vm2132 = vweird.f32 %v2111
          %vm2133 = vweird.f32 %v2127
          %vm2134 = vmor %vm2132, %vm2133
          %v2135 = vsel %vm2134, %v2127, %v2131
          %v2136 = vand.u32 2147483647, %v2111
          %vm2137 = vcmp.eq.f32.partialorder %v2136, 8.507059e+37
          %v2138 = vand.u32 %v2111, 2147483648
          %v2139 = vor.u32 1.1754944e-38, %v2138
          %v2140 = vsel %vm2137, %v2139, %v2135
          %v2141 = vmul.f32 1.0, %v2140
          %v2142 = vld [vmem:[%s15] sm:$0x1]
          %v2144 = vperm.slane %v2142, 0
          %2145 = vrot.lane.b32.xlu0 %v2144, 64
          %v2146 = vpop.permute.xlu0 %2145
          %v2148 = vadd.f32 %v2038, %v2146
          %v2149 = vadd.f32 %v2040, %v2146
          %v2150 = vld [vmem:[%s16] sm:$0x1]
          %v2152 = vperm.slane %v2150, 0
          %2153 = vrot.lane.b32.xlu0 %v2152, 96
          %v2154 = vpop.permute.xlu0 %2153
          %v2156 = vadd.f32 %v1994, %v2154
          %v2157 = vadd.f32 %v1996, %v2154
          %2160 = vrot.lane.b32.xlu0 %v2156, 32
          %v2161 = vpop.permute.xlu0 %2160
          %2162 = vrot.lane.b32.xlu0 %v2157, 32
          %v2163 = vpop.permute.xlu0 %2162
          %v2166 = vmul.f32 %v2080, %v2161
          %v2167 = vmul.f32 %v2095, %v2163
          %2170 = vrot.lane.b32.xlu0 %v2166, 64
          %v2171 = vpop.permute.xlu0 %2170
          %2172 = vrot.lane.b32.xlu0 %v2167, 64
          %v2173 = vpop.permute.xlu0 %2172
          %v2176 = vadd.f32 %v2148, %v2171
          %v2177 = vadd.f32 %v2149, %v2173
          %v2178 = vtanh.pop %v2176
          %v2179 = vtanh.pop %v2177
          %v2180 = vsub.f32 1.0, %v2126
          %v2181 = vsub.f32 1.0, %v2141
          %2184 = vrot.lane.b32.xlu0 %v2178, 96
          %v2185 = vpop.permute.xlu0 %2184
          %2186 = vrot.lane.b32.xlu0 %v2179, 96
          %v2187 = vpop.permute.xlu0 %2186
          %v2190 = vmul.f32 %v2180, %v2185
          %v2191 = vmul.f32 %v2181, %v2187
          %2194 = vrot.lane.b32.xlu0 %v729, 32
          %v2195 = vpop.permute.xlu0 %2194
          %2196 = vrot.lane.b32.xlu0 %v730, 32
          %v2197 = vpop.permute.xlu0 %2196
          %v2200 = vmul.f32 %v2126, %v2195
          %v2201 = vmul.f32 %v2141, %v2197
          %v2202 = vadd.f32 %v2190, %v2200
          %v2203 = vadd.f32 %v2191, %v2201
          %2206 = vrot.lane.b32.xlu0 %v2202, 96
          %v2207 = vpop.permute.xlu0 %2206
          %2208 = vrot.lane.b32.xlu0 %v2203, 96
          %v2209 = vpop.permute.xlu0 %2208
          %2212 = vst.msk [vmem:[#allocation2] sm:$0xff] %vm911, %v2207
          %2213 = vst.msk [vmem:[#allocation2 + $0x8] sm:$0xff] %vm911, %v2209
          %2214 = vst.msk [vmem:[#allocation4] sm:$0xff] %vm911, %v2207
          %2215 = vst.msk [vmem:[#allocation4 + $0x8] sm:$0xff] %vm911, %v2209
        $region112: #{tpu_custom_call.1} parent=99 // pred_fallthru
          _
        // Predicated region
        $region113: #{tpu_custom_call.1} parent=99 // pred_check
          %p2216 = pneg %p492
        $region114: #{tpu_custom_call.1} parent=99 // pred_check_branch
          %2218 = sbr.rel (%p2216) target = $region116
        $region115: #{tpu_custom_call.1} parent=99 // pred_region
          %2220 = vsyncadd [#allocation5], 0
          %s2221 = sshll.u32 [#allocation4], 4
          %s2222 = int_to_ptr.vmem [resolvable:$true] %s2221
          %s2223 = sshll.u32 %s20, 4
          %s2224 = int_to_ptr.hbm [resolvable:$true] %s2223
          %2229 = dma.vmem_to_hbm [thread:$0]  %s2222, 256, %s2224, [#allocation5], 128, 128, 8
        $region116: #{tpu_custom_call.1} parent=99 // pred_fallthru
          _
        // Predicated region
        $region117: #{tpu_custom_call.1} parent=99 // pred_check
          %p2230 = pneg %p492
        $region118: #{tpu_custom_call.1} parent=99 // pred_check_branch
          %2232 = sbr.rel (%p2230) target = $region120
        $region119: #{tpu_custom_call.1} parent=99 // pred_region
          %2234 = dma.done [#allocation5], 256
        $region120: #{tpu_custom_call.1} parent=99 // pred_fallthru
          _
      $region100: #{tpu_custom_call.1} parent=5 // pred_fallthru
        _
      %p2235 = scmp.le.s32.totalorder 2, %s27
      // Predicated region
      $region121: #{tpu_custom_call.1} parent=5 // pred_check
        %p2236 = pneg %p2235
      $region122: #{tpu_custom_call.1} parent=5 // pred_check_branch
        %2238 = sbr.rel (%p2236) target = $region124
      $region123: #{tpu_custom_call.1} parent=5 // pred_region
        %s2239 = ssub.s32 %s27, 2
      $region124: #{tpu_custom_call.1} parent=5 // pred_fallthru
        _
    $region6: #{tpu_custom_call.1} parent=1 // loop_footer
      %s31 = sadd.s32 1, %s27
    $region7: #{tpu_custom_call.1} parent=1 // loop_footer_branch
      %26 = sbr.rel target = $region3
    $region8: #{tpu_custom_call.1} parent=1 // loop_exit
      _
    %2240 = vsyncpa [#allocation5], 1
    %s2241 = scalar_lea.sflag [#allocation5], 1
    %2242 = vsyncpa %s2241, 1

</llo_original>
